<compile_context>
chip_gen: v7x
topology: tpu7x:2x2x1
jax: 0.10.0
libtpu: 0.0.40
codegen_flags: <defaults>
</compile_context>

<pallas_src>
import functools

import jax
import jax.numpy as jnp
from jax import lax
from jax.experimental import pallas as pl
from jax.experimental.pallas import tpu as pltpu


def _atrous_sep_conv_kernel(x_ref, dww_ref, pww_ref, fb_ref, o_ref,
                            *, KH, KW, Ho, Wo, stride, dilation, Cin, Cout):
    """One grid step = one batch element (NCHW plane layout).

    x_ref  : (Cin, Hp, Wp) VMEM   spatially padded input planes
    dww_ref: (Cin*KH*KW,)  SMEM   depthwise weights, w[c,kh,kw] at c*KH*KW+kh*KW+kw
    pww_ref: (Cout*Cin,)   SMEM   pointwise weights, w[co,c] at co*Cin+c
    fb_ref : (Cout,)       SMEM   fused bias = pw_w @ dw_b + pw_b
    o_ref  : (Cout, Ho, Wo) VMEM  output planes (NCHW block)
    """

    def tap(c, kh, kw):
        h0 = kh * dilation
        w0 = kw * dilation
        if stride == 1:
            # plain offset load straight from the ref (no value slicing)
            return x_ref[c, h0:h0 + Ho, w0:w0 + Wo]
        # general stride: read the dense window, then subsample the value
        win = x_ref[c,
                    h0:h0 + (Ho - 1) * stride + 1,
                    w0:w0 + (Wo - 1) * stride + 1]
        return win[::stride, ::stride]

    # ---- depthwise dilated conv: per-channel (Ho, Wo) planes, f32 accumulate
    dw_planes = []
    for c in range(Cin):
        base = c * KH * KW
        acc = tap(c, 0, 0) * dww_ref[base]          # init with first tap
        for t in range(1, KH * KW):
            kh, kw = divmod(t, KW)
            acc = acc + tap(c, kh, kw) * dww_ref[base + t]
        dw_planes.append(acc)

    # ---- pointwise 1x1 conv: per-output-channel broadcast-MAC over Cin planes
    for co in range(Cout):
        out = dw_planes[0] * pww_ref[co * Cin]
        for c in range(1, Cin):
            out = out + dw_planes[c] * pww_ref[co * Cin + c]
        o_ref[co, :, :] = (out + fb_ref[co]).astype(o_ref.dtype)


def atrous_separable_convolution(x_nchw, dw_w, dw_b, pw_w, pw_b,
                                 *, stride=1, padding=0, dilation=1):
    """x_nchw: (N, Cin, H, W) f32
       dw_w  : (Cin, KH, KW)  depthwise weights (torch (Cin,1,KH,KW) squeezed)
       dw_b  : (Cin,)
       pw_w  : (Cout, Cin)    pointwise weights (torch (Cout,Cin,1,1) squeezed)
       pw_b  : (Cout,)
       returns (N, Cout, Ho, Wo) — already NCHW, no output transpose needed."""
    N, Cin, H, W = x_nchw.shape
    _, KH, KW = dw_w.shape
    Cout = pw_w.shape[0]

    Ho = (H + 2 * padding - dilation * (KH - 1) - 1) // stride + 1
    Wo = (W + 2 * padding - dilation * (KW - 1) - 1) // stride + 1

    # Only remaining glue: spatial zero-pad (stays NCHW, no transposes).
    xp = jnp.pad(x_nchw,
                 ((0, 0), (0, 0), (padding, padding), (padding, padding)))
    Hp, Wp = xp.shape[2], xp.shape[3]

    f32 = jnp.float32
    dww_flat = dw_w.astype(f32).reshape(Cin * KH * KW)
    pww_flat = pw_w.astype(f32).reshape(Cout * Cin)
    # Exact bias fold: PW(dw + dw_b) + pw_b == PW(dw) + (pw_w @ dw_b + pw_b)
    fused_b = pw_w.astype(f32) @ dw_b.astype(f32) + pw_b.astype(f32)

    kernel = functools.partial(
        _atrous_sep_conv_kernel,
        KH=KH, KW=KW, Ho=Ho, Wo=Wo, stride=stride, dilation=dilation,
        Cin=Cin, Cout=Cout)

    return pl.pallas_call(
        kernel,
        out_shape=jax.ShapeDtypeStruct((N, Cout, Ho, Wo), f32),
        grid_spec=pltpu.PrefetchScalarGridSpec(
            num_scalar_prefetch=0,
            grid=(N,),
            in_specs=[
                pl.BlockSpec((pl.Squeezed(), Cin, Hp, Wp),
                             lambda n: (n, 0, 0, 0)),
                pl.BlockSpec(memory_space=pltpu.MemorySpace.SMEM),
                pl.BlockSpec(memory_space=pltpu.MemorySpace.SMEM),
                pl.BlockSpec(memory_space=pltpu.MemorySpace.SMEM),
            ],
            out_specs=pl.BlockSpec((pl.Squeezed(), Cout, Ho, Wo),
                                   lambda n: (n, 0, 0, 0)),
        ),
        compiler_params=pltpu.CompilerParams(
            dimension_semantics=("parallel",),
            vmem_limit_bytes=32 * 1024 * 1024),
    )(xp.astype(f32), dww_flat, pww_flat, fused_b)


def _reference(x_nchw, dw_w, dw_b, pw_w, pw_b, *, stride, padding, dilation):
    """Pure-JAX reference using lax.conv_general_dilated (NCHW)."""
    Cin = x_nchw.shape[1]
    y = lax.conv_general_dilated(
        x_nchw, dw_w[:, None, :, :],
        window_strides=(stride, stride),
        padding=((padding, padding), (padding, padding)),
        rhs_dilation=(dilation, dilation),
        dimension_numbers=("NCHW", "OIHW", "NCHW"),
        feature_group_count=Cin,
        precision=lax.Precision.HIGHEST,
    ) + dw_b[None, :, None, None]
    z = lax.conv_general_dilated(
        y, pw_w[:, :, None, None],
        window_strides=(1, 1), padding=((0, 0), (0, 0)),
        dimension_numbers=("NCHW", "OIHW", "NCHW"),
        precision=lax.Precision.HIGHEST,
    ) + pw_b[None, :, None, None]
    return z


if __name__ == "__main__":
    # module config: in_channels=4, out_channels=8, kernel_size=3,
    #                stride=1, padding=2, dilation=2 (atrous), bias=True
    N, Cin, H, W = 2, 4, 16, 16
    Cout, K = 8, 3
    stride, padding, dilation = 1, 2, 2

    key = jax.random.PRNGKey(0)
    kx, k1, k2, k3, k4 = jax.random.split(key, 5)

    x = jax.random.normal(kx, (N, Cin, H, W), jnp.float32)

    # kaiming_normal_ style init (fan_in, gain=sqrt(2)), deterministic bias init.
    dw_w = jax.random.normal(k1, (Cin, K, K), jnp.float32) * jnp.sqrt(2.0 / (K * K))
    dw_b = jax.random.normal(k2, (Cin,), jnp.float32) * 0.1
    pw_w = jax.random.normal(k3, (Cout, Cin), jnp.float32) * jnp.sqrt(2.0 / Cin)
    pw_b = jax.random.normal(k4, (Cout,), jnp.float32) * 0.1

    out = atrous_separable_convolution(
        x, dw_w, dw_b, pw_w, pw_b,
        stride=stride, padding=padding, dilation=dilation)
    out = jax.block_until_ready(out)

    ref = _reference(x, dw_w, dw_b, pw_w, pw_b,
                     stride=stride, padding=padding, dilation=dilation)
    ref = jax.block_until_ready(ref)

    assert out.shape == ref.shape, (out.shape, ref.shape)
    max_err = float(jnp.max(jnp.abs(out - ref)))
    assert jnp.allclose(out, ref, atol=1e-3, rtol=1e-3), max_err

    print("KERNEL_OK")
</pallas_src>

<mosaic_0001>
module attributes {stable_mosaic.version = 11 : i64} {
  func.func @_atrous_sep_conv_kernel(%arg0: i32, %arg1: memref<1x4x20x20xf32, #tpu.memory_space<vmem>>, %arg2: memref<36xf32, #tpu.memory_space<smem>>, %arg3: memref<32xf32, #tpu.memory_space<smem>>, %arg4: memref<8xf32, #tpu.memory_space<smem>>, %arg5: memref<1x8x16x16xf32, #tpu.memory_space<vmem>>) attributes {dimension_semantics = [#tpu.dimension_semantics<parallel>], iteration_bounds = array<i64: 2>, scalar_prefetch = 0 : i64, scratch_operands = 0 : i64, tpu.core_type = #tpu.core_type<tc>, window_params = [{transform_indices = @transform_0, window_bounds = array<i64: 1, 4, 20, 20>}, {transform_indices = @transform_1, window_bounds = array<i64: 36>}, {transform_indices = @transform_2, window_bounds = array<i64: 32>}, {transform_indices = @transform_3, window_bounds = array<i64: 8>}, {transform_indices = @transform_4, window_bounds = array<i64: 1, 8, 16, 16>}]} {
    %c0 = arith.constant 0 : index
    %c0_0 = arith.constant 0 : index
    %c0_1 = arith.constant 0 : index
    %c0_2 = arith.constant 0 : index
    %0 = vector.load %arg1[%c0, %c0_0, %c0_1, %c0_2] : memref<1x4x20x20xf32, #tpu.memory_space<vmem>>, vector<1x1x16x16xf32>
    %1 = vector.shape_cast %0 : vector<1x1x16x16xf32> to vector<16x16xf32>
    %c0_3 = arith.constant 0 : index
    %2 = memref.load %arg2[%c0_3] : memref<36xf32, #tpu.memory_space<smem>>
    %3 = vector.broadcast %2 : f32 to vector<16x16xf32>
    %4 = arith.mulf %1, %3 : vector<16x16xf32>
    %c0_4 = arith.constant 0 : index
    %c0_5 = arith.constant 0 : index
    %c0_6 = arith.constant 0 : index
    %c2 = arith.constant 2 : index
    %5 = vector.load %arg1[%c0_4, %c0_5, %c0_6, %c2] : memref<1x4x20x20xf32, #tpu.memory_space<vmem>>, vector<1x1x16x16xf32>
    %6 = vector.shape_cast %5 : vector<1x1x16x16xf32> to vector<16x16xf32>
    %c1 = arith.constant 1 : index
    %7 = memref.load %arg2[%c1] : memref<36xf32, #tpu.memory_space<smem>>
    %8 = vector.broadcast %7 : f32 to vector<16x16xf32>
    %9 = arith.mulf %6, %8 : vector<16x16xf32>
    %10 = arith.addf %4, %9 : vector<16x16xf32>
    %c0_7 = arith.constant 0 : index
    %c0_8 = arith.constant 0 : index
    %c0_9 = arith.constant 0 : index
    %c4 = arith.constant 4 : index
    %11 = vector.load %arg1[%c0_7, %c0_8, %c0_9, %c4] : memref<1x4x20x20xf32, #tpu.memory_space<vmem>>, vector<1x1x16x16xf32>
    %12 = vector.shape_cast %11 : vector<1x1x16x16xf32> to vector<16x16xf32>
    %c2_10 = arith.constant 2 : index
    %13 = memref.load %arg2[%c2_10] : memref<36xf32, #tpu.memory_space<smem>>
    %14 = vector.broadcast %13 : f32 to vector<16x16xf32>
    %15 = arith.mulf %12, %14 : vector<16x16xf32>
    %16 = arith.addf %10, %15 : vector<16x16xf32>
    %c0_11 = arith.constant 0 : index
    %c0_12 = arith.constant 0 : index
    %c2_13 = arith.constant 2 : index
    %c0_14 = arith.constant 0 : index
    %17 = vector.load %arg1[%c0_11, %c0_12, %c2_13, %c0_14] : memref<1x4x20x20xf32, #tpu.memory_space<vmem>>, vector<1x1x16x16xf32>
    %18 = vector.shape_cast %17 : vector<1x1x16x16xf32> to vector<16x16xf32>
    %c3 = arith.constant 3 : index
    %19 = memref.load %arg2[%c3] : memref<36xf32, #tpu.memory_space<smem>>
    %20 = vector.broadcast %19 : f32 to vector<16x16xf32>
    %21 = arith.mulf %18, %20 : vector<16x16xf32>
    %22 = arith.addf %16, %21 : vector<16x16xf32>
    %c0_15 = arith.constant 0 : index
    %c0_16 = arith.constant 0 : index
    %c2_17 = arith.constant 2 : index
    %c2_18 = arith.constant 2 : index
    %23 = vector.load %arg1[%c0_15, %c0_16, %c2_17, %c2_18] : memref<1x4x20x20xf32, #tpu.memory_space<vmem>>, vector<1x1x16x16xf32>
    %24 = vector.shape_cast %23 : vector<1x1x16x16xf32> to vector<16x16xf32>
    %c4_19 = arith.constant 4 : index
    %25 = memref.load %arg2[%c4_19] : memref<36xf32, #tpu.memory_space<smem>>
    %26 = vector.broadcast %25 : f32 to vector<16x16xf32>
    %27 = arith.mulf %24, %26 : vector<16x16xf32>
    %28 = arith.addf %22, %27 : vector<16x16xf32>
    %c0_20 = arith.constant 0 : index
    %c0_21 = arith.constant 0 : index
    %c2_22 = arith.constant 2 : index
    %c4_23 = arith.constant 4 : index
    %29 = vector.load %arg1[%c0_20, %c0_21, %c2_22, %c4_23] : memref<1x4x20x20xf32, #tpu.memory_space<vmem>>, vector<1x1x16x16xf32>
    %30 = vector.shape_cast %29 : vector<1x1x16x16xf32> to vector<16x16xf32>
    %c5 = arith.constant 5 : index
    %31 = memref.load %arg2[%c5] : memref<36xf32, #tpu.memory_space<smem>>
    %32 = vector.broadcast %31 : f32 to vector<16x16xf32>
    %33 = arith.mulf %30, %32 : vector<16x16xf32>
    %34 = arith.addf %28, %33 : vector<16x16xf32>
    %c0_24 = arith.constant 0 : index
    %c0_25 = arith.constant 0 : index
    %c4_26 = arith.constant 4 : index
    %c0_27 = arith.constant 0 : index
    %35 = vector.load %arg1[%c0_24, %c0_25, %c4_26, %c0_27] : memref<1x4x20x20xf32, #tpu.memory_space<vmem>>, vector<1x1x16x16xf32>
    %36 = vector.shape_cast %35 : vector<1x1x16x16xf32> to vector<16x16xf32>
    %c6 = arith.constant 6 : index
    %37 = memref.load %arg2[%c6] : memref<36xf32, #tpu.memory_space<smem>>
    %38 = vector.broadcast %37 : f32 to vector<16x16xf32>
    %39 = arith.mulf %36, %38 : vector<16x16xf32>
    %40 = arith.addf %34, %39 : vector<16x16xf32>
    %c0_28 = arith.constant 0 : index
    %c0_29 = arith.constant 0 : index
    %c4_30 = arith.constant 4 : index
    %c2_31 = arith.constant 2 : index
    %41 = vector.load %arg1[%c0_28, %c0_29, %c4_30, %c2_31] : memref<1x4x20x20xf32, #tpu.memory_space<vmem>>, vector<1x1x16x16xf32>
    %42 = vector.shape_cast %41 : vector<1x1x16x16xf32> to vector<16x16xf32>
    %c7 = arith.constant 7 : index
    %43 = memref.load %arg2[%c7] : memref<36xf32, #tpu.memory_space<smem>>
    %44 = vector.broadcast %43 : f32 to vector<16x16xf32>
    %45 = arith.mulf %42, %44 : vector<16x16xf32>
    %46 = arith.addf %40, %45 : vector<16x16xf32>
    %c0_32 = arith.constant 0 : index
    %c0_33 = arith.constant 0 : index
    %c4_34 = arith.constant 4 : index
    %c4_35 = arith.constant 4 : index
    %47 = vector.load %arg1[%c0_32, %c0_33, %c4_34, %c4_35] : memref<1x4x20x20xf32, #tpu.memory_space<vmem>>, vector<1x1x16x16xf32>
    %48 = vector.shape_cast %47 : vector<1x1x16x16xf32> to vector<16x16xf32>
    %c8 = arith.constant 8 : index
    %49 = memref.load %arg2[%c8] : memref<36xf32, #tpu.memory_space<smem>>
    %50 = vector.broadcast %49 : f32 to vector<16x16xf32>
    %51 = arith.mulf %48, %50 : vector<16x16xf32>
    %52 = arith.addf %46, %51 : vector<16x16xf32>
    %c0_36 = arith.constant 0 : index
    %c1_37 = arith.constant 1 : index
    %c0_38 = arith.constant 0 : index
    %c0_39 = arith.constant 0 : index
    %53 = vector.load %arg1[%c0_36, %c1_37, %c0_38, %c0_39] : memref<1x4x20x20xf32, #tpu.memory_space<vmem>>, vector<1x1x16x16xf32>
    %54 = vector.shape_cast %53 : vector<1x1x16x16xf32> to vector<16x16xf32>
    %c9 = arith.constant 9 : index
    %55 = memref.load %arg2[%c9] : memref<36xf32, #tpu.memory_space<smem>>
    %56 = vector.broadcast %55 : f32 to vector<16x16xf32>
    %57 = arith.mulf %54, %56 : vector<16x16xf32>
    %c0_40 = arith.constant 0 : index
    %c1_41 = arith.constant 1 : index
    %c0_42 = arith.constant 0 : index
    %c2_43 = arith.constant 2 : index
    %58 = vector.load %arg1[%c0_40, %c1_41, %c0_42, %c2_43] : memref<1x4x20x20xf32, #tpu.memory_space<vmem>>, vector<1x1x16x16xf32>
    %59 = vector.shape_cast %58 : vector<1x1x16x16xf32> to vector<16x16xf32>
    %c10 = arith.constant 10 : index
    %60 = memref.load %arg2[%c10] : memref<36xf32, #tpu.memory_space<smem>>
    %61 = vector.broadcast %60 : f32 to vector<16x16xf32>
    %62 = arith.mulf %59, %61 : vector<16x16xf32>
    %63 = arith.addf %57, %62 : vector<16x16xf32>
    %c0_44 = arith.constant 0 : index
    %c1_45 = arith.constant 1 : index
    %c0_46 = arith.constant 0 : index
    %c4_47 = arith.constant 4 : index
    %64 = vector.load %arg1[%c0_44, %c1_45, %c0_46, %c4_47] : memref<1x4x20x20xf32, #tpu.memory_space<vmem>>, vector<1x1x16x16xf32>
    %65 = vector.shape_cast %64 : vector<1x1x16x16xf32> to vector<16x16xf32>
    %c11 = arith.constant 11 : index
    %66 = memref.load %arg2[%c11] : memref<36xf32, #tpu.memory_space<smem>>
    %67 = vector.broadcast %66 : f32 to vector<16x16xf32>
    %68 = arith.mulf %65, %67 : vector<16x16xf32>
    %69 = arith.addf %63, %68 : vector<16x16xf32>
    %c0_48 = arith.constant 0 : index
    %c1_49 = arith.constant 1 : index
    %c2_50 = arith.constant 2 : index
    %c0_51 = arith.constant 0 : index
    %70 = vector.load %arg1[%c0_48, %c1_49, %c2_50, %c0_51] : memref<1x4x20x20xf32, #tpu.memory_space<vmem>>, vector<1x1x16x16xf32>
    %71 = vector.shape_cast %70 : vector<1x1x16x16xf32> to vector<16x16xf32>
    %c12 = arith.constant 12 : index
    %72 = memref.load %arg2[%c12] : memref<36xf32, #tpu.memory_space<smem>>
    %73 = vector.broadcast %72 : f32 to vector<16x16xf32>
    %74 = arith.mulf %71, %73 : vector<16x16xf32>
    %75 = arith.addf %69, %74 : vector<16x16xf32>
    %c0_52 = arith.constant 0 : index
    %c1_53 = arith.constant 1 : index
    %c2_54 = arith.constant 2 : index
    %c2_55 = arith.constant 2 : index
    %76 = vector.load %arg1[%c0_52, %c1_53, %c2_54, %c2_55] : memref<1x4x20x20xf32, #tpu.memory_space<vmem>>, vector<1x1x16x16xf32>
    %77 = vector.shape_cast %76 : vector<1x1x16x16xf32> to vector<16x16xf32>
    %c13 = arith.constant 13 : index
    %78 = memref.load %arg2[%c13] : memref<36xf32, #tpu.memory_space<smem>>
    %79 = vector.broadcast %78 : f32 to vector<16x16xf32>
    %80 = arith.mulf %77, %79 : vector<16x16xf32>
    %81 = arith.addf %75, %80 : vector<16x16xf32>
    %c0_56 = arith.constant 0 : index
    %c1_57 = arith.constant 1 : index
    %c2_58 = arith.constant 2 : index
    %c4_59 = arith.constant 4 : index
    %82 = vector.load %arg1[%c0_56, %c1_57, %c2_58, %c4_59] : memref<1x4x20x20xf32, #tpu.memory_space<vmem>>, vector<1x1x16x16xf32>
    %83 = vector.shape_cast %82 : vector<1x1x16x16xf32> to vector<16x16xf32>
    %c14 = arith.constant 14 : index
    %84 = memref.load %arg2[%c14] : memref<36xf32, #tpu.memory_space<smem>>
    %85 = vector.broadcast %84 : f32 to vector<16x16xf32>
    %86 = arith.mulf %83, %85 : vector<16x16xf32>
    %87 = arith.addf %81, %86 : vector<16x16xf32>
    %c0_60 = arith.constant 0 : index
    %c1_61 = arith.constant 1 : index
    %c4_62 = arith.constant 4 : index
    %c0_63 = arith.constant 0 : index
    %88 = vector.load %arg1[%c0_60, %c1_61, %c4_62, %c0_63] : memref<1x4x20x20xf32, #tpu.memory_space<vmem>>, vector<1x1x16x16xf32>
    %89 = vector.shape_cast %88 : vector<1x1x16x16xf32> to vector<16x16xf32>
    %c15 = arith.constant 15 : index
    %90 = memref.load %arg2[%c15] : memref<36xf32, #tpu.memory_space<smem>>
    %91 = vector.broadcast %90 : f32 to vector<16x16xf32>
    %92 = arith.mulf %89, %91 : vector<16x16xf32>
    %93 = arith.addf %87, %92 : vector<16x16xf32>
    %c0_64 = arith.constant 0 : index
    %c1_65 = arith.constant 1 : index
    %c4_66 = arith.constant 4 : index
    %c2_67 = arith.constant 2 : index
    %94 = vector.load %arg1[%c0_64, %c1_65, %c4_66, %c2_67] : memref<1x4x20x20xf32, #tpu.memory_space<vmem>>, vector<1x1x16x16xf32>
    %95 = vector.shape_cast %94 : vector<1x1x16x16xf32> to vector<16x16xf32>
    %c16 = arith.constant 16 : index
    %96 = memref.load %arg2[%c16] : memref<36xf32, #tpu.memory_space<smem>>
    %97 = vector.broadcast %96 : f32 to vector<16x16xf32>
    %98 = arith.mulf %95, %97 : vector<16x16xf32>
    %99 = arith.addf %93, %98 : vector<16x16xf32>
    %c0_68 = arith.constant 0 : index
    %c1_69 = arith.constant 1 : index
    %c4_70 = arith.constant 4 : index
    %c4_71 = arith.constant 4 : index
    %100 = vector.load %arg1[%c0_68, %c1_69, %c4_70, %c4_71] : memref<1x4x20x20xf32, #tpu.memory_space<vmem>>, vector<1x1x16x16xf32>
    %101 = vector.shape_cast %100 : vector<1x1x16x16xf32> to vector<16x16xf32>
    %c17 = arith.constant 17 : index
    %102 = memref.load %arg2[%c17] : memref<36xf32, #tpu.memory_space<smem>>
    %103 = vector.broadcast %102 : f32 to vector<16x16xf32>
    %104 = arith.mulf %101, %103 : vector<16x16xf32>
    %105 = arith.addf %99, %104 : vector<16x16xf32>
    %c0_72 = arith.constant 0 : index
    %c2_73 = arith.constant 2 : index
    %c0_74 = arith.constant 0 : index
    %c0_75 = arith.constant 0 : index
    %106 = vector.load %arg1[%c0_72, %c2_73, %c0_74, %c0_75] : memref<1x4x20x20xf32, #tpu.memory_space<vmem>>, vector<1x1x16x16xf32>
    %107 = vector.shape_cast %106 : vector<1x1x16x16xf32> to vector<16x16xf32>
    %c18 = arith.constant 18 : index
    %108 = memref.load %arg2[%c18] : memref<36xf32, #tpu.memory_space<smem>>
    %109 = vector.broadcast %108 : f32 to vector<16x16xf32>
    %110 = arith.mulf %107, %109 : vector<16x16xf32>
    %c0_76 = arith.constant 0 : index
    %c2_77 = arith.constant 2 : index
    %c0_78 = arith.constant 0 : index
    %c2_79 = arith.constant 2 : index
    %111 = vector.load %arg1[%c0_76, %c2_77, %c0_78, %c2_79] : memref<1x4x20x20xf32, #tpu.memory_space<vmem>>, vector<1x1x16x16xf32>
    %112 = vector.shape_cast %111 : vector<1x1x16x16xf32> to vector<16x16xf32>
    %c19 = arith.constant 19 : index
    %113 = memref.load %arg2[%c19] : memref<36xf32, #tpu.memory_space<smem>>
    %114 = vector.broadcast %113 : f32 to vector<16x16xf32>
    %115 = arith.mulf %112, %114 : vector<16x16xf32>
    %116 = arith.addf %110, %115 : vector<16x16xf32>
    %c0_80 = arith.constant 0 : index
    %c2_81 = arith.constant 2 : index
    %c0_82 = arith.constant 0 : index
    %c4_83 = arith.constant 4 : index
    %117 = vector.load %arg1[%c0_80, %c2_81, %c0_82, %c4_83] : memref<1x4x20x20xf32, #tpu.memory_space<vmem>>, vector<1x1x16x16xf32>
    %118 = vector.shape_cast %117 : vector<1x1x16x16xf32> to vector<16x16xf32>
    %c20 = arith.constant 20 : index
    %119 = memref.load %arg2[%c20] : memref<36xf32, #tpu.memory_space<smem>>
    %120 = vector.broadcast %119 : f32 to vector<16x16xf32>
    %121 = arith.mulf %118, %120 : vector<16x16xf32>
    %122 = arith.addf %116, %121 : vector<16x16xf32>
    %c0_84 = arith.constant 0 : index
    %c2_85 = arith.constant 2 : index
    %c2_86 = arith.constant 2 : index
    %c0_87 = arith.constant 0 : index
    %123 = vector.load %arg1[%c0_84, %c2_85, %c2_86, %c0_87] : memref<1x4x20x20xf32, #tpu.memory_space<vmem>>, vector<1x1x16x16xf32>
    %124 = vector.shape_cast %123 : vector<1x1x16x16xf32> to vector<16x16xf32>
    %c21 = arith.constant 21 : index
    %125 = memref.load %arg2[%c21] : memref<36xf32, #tpu.memory_space<smem>>
    %126 = vector.broadcast %125 : f32 to vector<16x16xf32>
    %127 = arith.mulf %124, %126 : vector<16x16xf32>
    %128 = arith.addf %122, %127 : vector<16x16xf32>
    %c0_88 = arith.constant 0 : index
    %c2_89 = arith.constant 2 : index
    %c2_90 = arith.constant 2 : index
    %c2_91 = arith.constant 2 : index
    %129 = vector.load %arg1[%c0_88, %c2_89, %c2_90, %c2_91] : memref<1x4x20x20xf32, #tpu.memory_space<vmem>>, vector<1x1x16x16xf32>
    %130 = vector.shape_cast %129 : vector<1x1x16x16xf32> to vector<16x16xf32>
    %c22 = arith.constant 22 : index
    %131 = memref.load %arg2[%c22] : memref<36xf32, #tpu.memory_space<smem>>
    %132 = vector.broadcast %131 : f32 to vector<16x16xf32>
    %133 = arith.mulf %130, %132 : vector<16x16xf32>
    %134 = arith.addf %128, %133 : vector<16x16xf32>
    %c0_92 = arith.constant 0 : index
    %c2_93 = arith.constant 2 : index
    %c2_94 = arith.constant 2 : index
    %c4_95 = arith.constant 4 : index
    %135 = vector.load %arg1[%c0_92, %c2_93, %c2_94, %c4_95] : memref<1x4x20x20xf32, #tpu.memory_space<vmem>>, vector<1x1x16x16xf32>
    %136 = vector.shape_cast %135 : vector<1x1x16x16xf32> to vector<16x16xf32>
    %c23 = arith.constant 23 : index
    %137 = memref.load %arg2[%c23] : memref<36xf32, #tpu.memory_space<smem>>
    %138 = vector.broadcast %137 : f32 to vector<16x16xf32>
    %139 = arith.mulf %136, %138 : vector<16x16xf32>
    %140 = arith.addf %134, %139 : vector<16x16xf32>
    %c0_96 = arith.constant 0 : index
    %c2_97 = arith.constant 2 : index
    %c4_98 = arith.constant 4 : index
    %c0_99 = arith.constant 0 : index
    %141 = vector.load %arg1[%c0_96, %c2_97, %c4_98, %c0_99] : memref<1x4x20x20xf32, #tpu.memory_space<vmem>>, vector<1x1x16x16xf32>
    %142 = vector.shape_cast %141 : vector<1x1x16x16xf32> to vector<16x16xf32>
    %c24 = arith.constant 24 : index
    %143 = memref.load %arg2[%c24] : memref<36xf32, #tpu.memory_space<smem>>
    %144 = vector.broadcast %143 : f32 to vector<16x16xf32>
    %145 = arith.mulf %142, %144 : vector<16x16xf32>
    %146 = arith.addf %140, %145 : vector<16x16xf32>
    %c0_100 = arith.constant 0 : index
    %c2_101 = arith.constant 2 : index
    %c4_102 = arith.constant 4 : index
    %c2_103 = arith.constant 2 : index
    %147 = vector.load %arg1[%c0_100, %c2_101, %c4_102, %c2_103] : memref<1x4x20x20xf32, #tpu.memory_space<vmem>>, vector<1x1x16x16xf32>
    %148 = vector.shape_cast %147 : vector<1x1x16x16xf32> to vector<16x16xf32>
    %c25 = arith.constant 25 : index
    %149 = memref.load %arg2[%c25] : memref<36xf32, #tpu.memory_space<smem>>
    %150 = vector.broadcast %149 : f32 to vector<16x16xf32>
    %151 = arith.mulf %148, %150 : vector<16x16xf32>
    %152 = arith.addf %146, %151 : vector<16x16xf32>
    %c0_104 = arith.constant 0 : index
    %c2_105 = arith.constant 2 : index
    %c4_106 = arith.constant 4 : index
    %c4_107 = arith.constant 4 : index
    %153 = vector.load %arg1[%c0_104, %c2_105, %c4_106, %c4_107] : memref<1x4x20x20xf32, #tpu.memory_space<vmem>>, vector<1x1x16x16xf32>
    %154 = vector.shape_cast %153 : vector<1x1x16x16xf32> to vector<16x16xf32>
    %c26 = arith.constant 26 : index
    %155 = memref.load %arg2[%c26] : memref<36xf32, #tpu.memory_space<smem>>
    %156 = vector.broadcast %155 : f32 to vector<16x16xf32>
    %157 = arith.mulf %154, %156 : vector<16x16xf32>
    %158 = arith.addf %152, %157 : vector<16x16xf32>
    %c0_108 = arith.constant 0 : index
    %c3_109 = arith.constant 3 : index
    %c0_110 = arith.constant 0 : index
    %c0_111 = arith.constant 0 : index
    %159 = vector.load %arg1[%c0_108, %c3_109, %c0_110, %c0_111] : memref<1x4x20x20xf32, #tpu.memory_space<vmem>>, vector<1x1x16x16xf32>
    %160 = vector.shape_cast %159 : vector<1x1x16x16xf32> to vector<16x16xf32>
    %c27 = arith.constant 27 : index
    %161 = memref.load %arg2[%c27] : memref<36xf32, #tpu.memory_space<smem>>
    %162 = vector.broadcast %161 : f32 to vector<16x16xf32>
    %163 = arith.mulf %160, %162 : vector<16x16xf32>
    %c0_112 = arith.constant 0 : index
    %c3_113 = arith.constant 3 : index
    %c0_114 = arith.constant 0 : index
    %c2_115 = arith.constant 2 : index
    %164 = vector.load %arg1[%c0_112, %c3_113, %c0_114, %c2_115] : memref<1x4x20x20xf32, #tpu.memory_space<vmem>>, vector<1x1x16x16xf32>
    %165 = vector.shape_cast %164 : vector<1x1x16x16xf32> to vector<16x16xf32>
    %c28 = arith.constant 28 : index
    %166 = memref.load %arg2[%c28] : memref<36xf32, #tpu.memory_space<smem>>
    %167 = vector.broadcast %166 : f32 to vector<16x16xf32>
    %168 = arith.mulf %165, %167 : vector<16x16xf32>
    %169 = arith.addf %163, %168 : vector<16x16xf32>
    %c0_116 = arith.constant 0 : index
    %c3_117 = arith.constant 3 : index
    %c0_118 = arith.constant 0 : index
    %c4_119 = arith.constant 4 : index
    %170 = vector.load %arg1[%c0_116, %c3_117, %c0_118, %c4_119] : memref<1x4x20x20xf32, #tpu.memory_space<vmem>>, vector<1x1x16x16xf32>
    %171 = vector.shape_cast %170 : vector<1x1x16x16xf32> to vector<16x16xf32>
    %c29 = arith.constant 29 : index
    %172 = memref.load %arg2[%c29] : memref<36xf32, #tpu.memory_space<smem>>
    %173 = vector.broadcast %172 : f32 to vector<16x16xf32>
    %174 = arith.mulf %171, %173 : vector<16x16xf32>
    %175 = arith.addf %169, %174 : vector<16x16xf32>
    %c0_120 = arith.constant 0 : index
    %c3_121 = arith.constant 3 : index
    %c2_122 = arith.constant 2 : index
    %c0_123 = arith.constant 0 : index
    %176 = vector.load %arg1[%c0_120, %c3_121, %c2_122, %c0_123] : memref<1x4x20x20xf32, #tpu.memory_space<vmem>>, vector<1x1x16x16xf32>
    %177 = vector.shape_cast %176 : vector<1x1x16x16xf32> to vector<16x16xf32>
    %c30 = arith.constant 30 : index
    %178 = memref.load %arg2[%c30] : memref<36xf32, #tpu.memory_space<smem>>
    %179 = vector.broadcast %178 : f32 to vector<16x16xf32>
    %180 = arith.mulf %177, %179 : vector<16x16xf32>
    %181 = arith.addf %175, %180 : vector<16x16xf32>
    %c0_124 = arith.constant 0 : index
    %c3_125 = arith.constant 3 : index
    %c2_126 = arith.constant 2 : index
    %c2_127 = arith.constant 2 : index
    %182 = vector.load %arg1[%c0_124, %c3_125, %c2_126, %c2_127] : memref<1x4x20x20xf32, #tpu.memory_space<vmem>>, vector<1x1x16x16xf32>
    %183 = vector.shape_cast %182 : vector<1x1x16x16xf32> to vector<16x16xf32>
    %c31 = arith.constant 31 : index
    %184 = memref.load %arg2[%c31] : memref<36xf32, #tpu.memory_space<smem>>
    %185 = vector.broadcast %184 : f32 to vector<16x16xf32>
    %186 = arith.mulf %183, %185 : vector<16x16xf32>
    %187 = arith.addf %181, %186 : vector<16x16xf32>
    %c0_128 = arith.constant 0 : index
    %c3_129 = arith.constant 3 : index
    %c2_130 = arith.constant 2 : index
    %c4_131 = arith.constant 4 : index
    %188 = vector.load %arg1[%c0_128, %c3_129, %c2_130, %c4_131] : memref<1x4x20x20xf32, #tpu.memory_space<vmem>>, vector<1x1x16x16xf32>
    %189 = vector.shape_cast %188 : vector<1x1x16x16xf32> to vector<16x16xf32>
    %c32 = arith.constant 32 : index
    %190 = memref.load %arg2[%c32] : memref<36xf32, #tpu.memory_space<smem>>
    %191 = vector.broadcast %190 : f32 to vector<16x16xf32>
    %192 = arith.mulf %189, %191 : vector<16x16xf32>
    %193 = arith.addf %187, %192 : vector<16x16xf32>
    %c0_132 = arith.constant 0 : index
    %c3_133 = arith.constant 3 : index
    %c4_134 = arith.constant 4 : index
    %c0_135 = arith.constant 0 : index
    %194 = vector.load %arg1[%c0_132, %c3_133, %c4_134, %c0_135] : memref<1x4x20x20xf32, #tpu.memory_space<vmem>>, vector<1x1x16x16xf32>
    %195 = vector.shape_cast %194 : vector<1x1x16x16xf32> to vector<16x16xf32>
    %c33 = arith.constant 33 : index
    %196 = memref.load %arg2[%c33] : memref<36xf32, #tpu.memory_space<smem>>
    %197 = vector.broadcast %196 : f32 to vector<16x16xf32>
    %198 = arith.mulf %195, %197 : vector<16x16xf32>
    %199 = arith.addf %193, %198 : vector<16x16xf32>
    %c0_136 = arith.constant 0 : index
    %c3_137 = arith.constant 3 : index
    %c4_138 = arith.constant 4 : index
    %c2_139 = arith.constant 2 : index
    %200 = vector.load %arg1[%c0_136, %c3_137, %c4_138, %c2_139] : memref<1x4x20x20xf32, #tpu.memory_space<vmem>>, vector<1x1x16x16xf32>
    %201 = vector.shape_cast %200 : vector<1x1x16x16xf32> to vector<16x16xf32>
    %c34 = arith.constant 34 : index
    %202 = memref.load %arg2[%c34] : memref<36xf32, #tpu.memory_space<smem>>
    %203 = vector.broadcast %202 : f32 to vector<16x16xf32>
    %204 = arith.mulf %201, %203 : vector<16x16xf32>
    %205 = arith.addf %199, %204 : vector<16x16xf32>
    %c0_140 = arith.constant 0 : index
    %c3_141 = arith.constant 3 : index
    %c4_142 = arith.constant 4 : index
    %c4_143 = arith.constant 4 : index
    %206 = vector.load %arg1[%c0_140, %c3_141, %c4_142, %c4_143] : memref<1x4x20x20xf32, #tpu.memory_space<vmem>>, vector<1x1x16x16xf32>
    %207 = vector.shape_cast %206 : vector<1x1x16x16xf32> to vector<16x16xf32>
    %c35 = arith.constant 35 : index
    %208 = memref.load %arg2[%c35] : memref<36xf32, #tpu.memory_space<smem>>
    %209 = vector.broadcast %208 : f32 to vector<16x16xf32>
    %210 = arith.mulf %207, %209 : vector<16x16xf32>
    %211 = arith.addf %205, %210 : vector<16x16xf32>
    %c0_144 = arith.constant 0 : index
    %212 = memref.load %arg3[%c0_144] : memref<32xf32, #tpu.memory_space<smem>>
    %213 = vector.broadcast %212 : f32 to vector<16x16xf32>
    %214 = arith.mulf %52, %213 : vector<16x16xf32>
    %c1_145 = arith.constant 1 : index
    %215 = memref.load %arg3[%c1_145] : memref<32xf32, #tpu.memory_space<smem>>
    %216 = vector.broadcast %215 : f32 to vector<16x16xf32>
    %217 = arith.mulf %105, %216 : vector<16x16xf32>
    %218 = arith.addf %214, %217 : vector<16x16xf32>
    %c2_146 = arith.constant 2 : index
    %219 = memref.load %arg3[%c2_146] : memref<32xf32, #tpu.memory_space<smem>>
    %220 = vector.broadcast %219 : f32 to vector<16x16xf32>
    %221 = arith.mulf %158, %220 : vector<16x16xf32>
    %222 = arith.addf %218, %221 : vector<16x16xf32>
    %c3_147 = arith.constant 3 : index
    %223 = memref.load %arg3[%c3_147] : memref<32xf32, #tpu.memory_space<smem>>
    %224 = vector.broadcast %223 : f32 to vector<16x16xf32>
    %225 = arith.mulf %211, %224 : vector<16x16xf32>
    %226 = arith.addf %222, %225 : vector<16x16xf32>
    %c0_148 = arith.constant 0 : index
    %227 = memref.load %arg4[%c0_148] : memref<8xf32, #tpu.memory_space<smem>>
    %228 = vector.broadcast %227 : f32 to vector<16x16xf32>
    %229 = arith.addf %226, %228 : vector<16x16xf32>
    %c0_149 = arith.constant 0 : index
    %c0_150 = arith.constant 0 : index
    %c0_151 = arith.constant 0 : index
    %c0_152 = arith.constant 0 : index
    %230 = vector.load %arg5[%c0_149, %c0_150, %c0_151, %c0_152] : memref<1x8x16x16xf32, #tpu.memory_space<vmem>>, vector<1x1x16x16xf32>
    %231 = vector.shape_cast %230 : vector<1x1x16x16xf32> to vector<16x16xf32>
    %232 = vector.shape_cast %229 : vector<16x16xf32> to vector<1x1x16x16xf32>
    tpu.vector_store %arg5[%c0_149, %c0_150, %c0_151, %c0_152], %232 {strides = array<i32>} : memref<1x8x16x16xf32, #tpu.memory_space<vmem>>, vector<1x1x16x16xf32>,
    %c4_153 = arith.constant 4 : index
    %233 = memref.load %arg3[%c4_153] : memref<32xf32, #tpu.memory_space<smem>>
    %234 = vector.broadcast %233 : f32 to vector<16x16xf32>
    %235 = arith.mulf %52, %234 : vector<16x16xf32>
    %c5_154 = arith.constant 5 : index
    %236 = memref.load %arg3[%c5_154] : memref<32xf32, #tpu.memory_space<smem>>
    %237 = vector.broadcast %236 : f32 to vector<16x16xf32>
    %238 = arith.mulf %105, %237 : vector<16x16xf32>
    %239 = arith.addf %235, %238 : vector<16x16xf32>
    %c6_155 = arith.constant 6 : index
    %240 = memref.load %arg3[%c6_155] : memref<32xf32, #tpu.memory_space<smem>>
    %241 = vector.broadcast %240 : f32 to vector<16x16xf32>
    %242 = arith.mulf %158, %241 : vector<16x16xf32>
    %243 = arith.addf %239, %242 : vector<16x16xf32>
    %c7_156 = arith.constant 7 : index
    %244 = memref.load %arg3[%c7_156] : memref<32xf32, #tpu.memory_space<smem>>
    %245 = vector.broadcast %244 : f32 to vector<16x16xf32>
    %246 = arith.mulf %211, %245 : vector<16x16xf32>
    %247 = arith.addf %243, %246 : vector<16x16xf32>
    %c1_157 = arith.constant 1 : index
    %248 = memref.load %arg4[%c1_157] : memref<8xf32, #tpu.memory_space<smem>>
    %249 = vector.broadcast %248 : f32 to vector<16x16xf32>
    %250 = arith.addf %247, %249 : vector<16x16xf32>
    %c0_158 = arith.constant 0 : index
    %c1_159 = arith.constant 1 : index
    %c0_160 = arith.constant 0 : index
    %c0_161 = arith.constant 0 : index
    %251 = vector.load %arg5[%c0_158, %c1_159, %c0_160, %c0_161] : memref<1x8x16x16xf32, #tpu.memory_space<vmem>>, vector<1x1x16x16xf32>
    %252 = vector.shape_cast %251 : vector<1x1x16x16xf32> to vector<16x16xf32>
    %253 = vector.shape_cast %250 : vector<16x16xf32> to vector<1x1x16x16xf32>
    tpu.vector_store %arg5[%c0_158, %c1_159, %c0_160, %c0_161], %253 {strides = array<i32>} : memref<1x8x16x16xf32, #tpu.memory_space<vmem>>, vector<1x1x16x16xf32>,
    %c8_162 = arith.constant 8 : index
    %254 = memref.load %arg3[%c8_162] : memref<32xf32, #tpu.memory_space<smem>>
    %255 = vector.broadcast %254 : f32 to vector<16x16xf32>
    %256 = arith.mulf %52, %255 : vector<16x16xf32>
    %c9_163 = arith.constant 9 : index
    %257 = memref.load %arg3[%c9_163] : memref<32xf32, #tpu.memory_space<smem>>
    %258 = vector.broadcast %257 : f32 to vector<16x16xf32>
    %259 = arith.mulf %105, %258 : vector<16x16xf32>
    %260 = arith.addf %256, %259 : vector<16x16xf32>
    %c10_164 = arith.constant 10 : index
    %261 = memref.load %arg3[%c10_164] : memref<32xf32, #tpu.memory_space<smem>>
    %262 = vector.broadcast %261 : f32 to vector<16x16xf32>
    %263 = arith.mulf %158, %262 : vector<16x16xf32>
    %264 = arith.addf %260, %263 : vector<16x16xf32>
    %c11_165 = arith.constant 11 : index
    %265 = memref.load %arg3[%c11_165] : memref<32xf32, #tpu.memory_space<smem>>
    %266 = vector.broadcast %265 : f32 to vector<16x16xf32>
    %267 = arith.mulf %211, %266 : vector<16x16xf32>
    %268 = arith.addf %264, %267 : vector<16x16xf32>
    %c2_166 = arith.constant 2 : index
    %269 = memref.load %arg4[%c2_166] : memref<8xf32, #tpu.memory_space<smem>>
    %270 = vector.broadcast %269 : f32 to vector<16x16xf32>
    %271 = arith.addf %268, %270 : vector<16x16xf32>
    %c0_167 = arith.constant 0 : index
    %c2_168 = arith.constant 2 : index
    %c0_169 = arith.constant 0 : index
    %c0_170 = arith.constant 0 : index
    %272 = vector.load %arg5[%c0_167, %c2_168, %c0_169, %c0_170] : memref<1x8x16x16xf32, #tpu.memory_space<vmem>>, vector<1x1x16x16xf32>
    %273 = vector.shape_cast %272 : vector<1x1x16x16xf32> to vector<16x16xf32>
    %274 = vector.shape_cast %271 : vector<16x16xf32> to vector<1x1x16x16xf32>
    tpu.vector_store %arg5[%c0_167, %c2_168, %c0_169, %c0_170], %274 {strides = array<i32>} : memref<1x8x16x16xf32, #tpu.memory_space<vmem>>, vector<1x1x16x16xf32>,
    %c12_171 = arith.constant 12 : index
    %275 = memref.load %arg3[%c12_171] : memref<32xf32, #tpu.memory_space<smem>>
    %276 = vector.broadcast %275 : f32 to vector<16x16xf32>
    %277 = arith.mulf %52, %276 : vector<16x16xf32>
    %c13_172 = arith.constant 13 : index
    %278 = memref.load %arg3[%c13_172] : memref<32xf32, #tpu.memory_space<smem>>
    %279 = vector.broadcast %278 : f32 to vector<16x16xf32>
    %280 = arith.mulf %105, %279 : vector<16x16xf32>
    %281 = arith.addf %277, %280 : vector<16x16xf32>
    %c14_173 = arith.constant 14 : index
    %282 = memref.load %arg3[%c14_173] : memref<32xf32, #tpu.memory_space<smem>>
    %283 = vector.broadcast %282 : f32 to vector<16x16xf32>
    %284 = arith.mulf %158, %283 : vector<16x16xf32>
    %285 = arith.addf %281, %284 : vector<16x16xf32>
    %c15_174 = arith.constant 15 : index
    %286 = memref.load %arg3[%c15_174] : memref<32xf32, #tpu.memory_space<smem>>
    %287 = vector.broadcast %286 : f32 to vector<16x16xf32>
    %288 = arith.mulf %211, %287 : vector<16x16xf32>
    %289 = arith.addf %285, %288 : vector<16x16xf32>
    %c3_175 = arith.constant 3 : index
    %290 = memref.load %arg4[%c3_175] : memref<8xf32, #tpu.memory_space<smem>>
    %291 = vector.broadcast %290 : f32 to vector<16x16xf32>
    %292 = arith.addf %289, %291 : vector<16x16xf32>
    %c0_176 = arith.constant 0 : index
    %c3_177 = arith.constant 3 : index
    %c0_178 = arith.constant 0 : index
    %c0_179 = arith.constant 0 : index
    %293 = vector.load %arg5[%c0_176, %c3_177, %c0_178, %c0_179] : memref<1x8x16x16xf32, #tpu.memory_space<vmem>>, vector<1x1x16x16xf32>
    %294 = vector.shape_cast %293 : vector<1x1x16x16xf32> to vector<16x16xf32>
    %295 = vector.shape_cast %292 : vector<16x16xf32> to vector<1x1x16x16xf32>
    tpu.vector_store %arg5[%c0_176, %c3_177, %c0_178, %c0_179], %295 {strides = array<i32>} : memref<1x8x16x16xf32, #tpu.memory_space<vmem>>, vector<1x1x16x16xf32>,
    %c16_180 = arith.constant 16 : index
    %296 = memref.load %arg3[%c16_180] : memref<32xf32, #tpu.memory_space<smem>>
    %297 = vector.broadcast %296 : f32 to vector<16x16xf32>
    %298 = arith.mulf %52, %297 : vector<16x16xf32>
    %c17_181 = arith.constant 17 : index
    %299 = memref.load %arg3[%c17_181] : memref<32xf32, #tpu.memory_space<smem>>
    %300 = vector.broadcast %299 : f32 to vector<16x16xf32>
    %301 = arith.mulf %105, %300 : vector<16x16xf32>
    %302 = arith.addf %298, %301 : vector<16x16xf32>
    %c18_182 = arith.constant 18 : index
    %303 = memref.load %arg3[%c18_182] : memref<32xf32, #tpu.memory_space<smem>>
    %304 = vector.broadcast %303 : f32 to vector<16x16xf32>
    %305 = arith.mulf %158, %304 : vector<16x16xf32>
    %306 = arith.addf %302, %305 : vector<16x16xf32>
    %c19_183 = arith.constant 19 : index
    %307 = memref.load %arg3[%c19_183] : memref<32xf32, #tpu.memory_space<smem>>
    %308 = vector.broadcast %307 : f32 to vector<16x16xf32>
    %309 = arith.mulf %211, %308 : vector<16x16xf32>
    %310 = arith.addf %306, %309 : vector<16x16xf32>
    %c4_184 = arith.constant 4 : index
    %311 = memref.load %arg4[%c4_184] : memref<8xf32, #tpu.memory_space<smem>>
    %312 = vector.broadcast %311 : f32 to vector<16x16xf32>
    %313 = arith.addf %310, %312 : vector<16x16xf32>
    %c0_185 = arith.constant 0 : index
    %c4_186 = arith.constant 4 : index
    %c0_187 = arith.constant 0 : index
    %c0_188 = arith.constant 0 : index
    %314 = vector.load %arg5[%c0_185, %c4_186, %c0_187, %c0_188] : memref<1x8x16x16xf32, #tpu.memory_space<vmem>>, vector<1x1x16x16xf32>
    %315 = vector.shape_cast %314 : vector<1x1x16x16xf32> to vector<16x16xf32>
    %316 = vector.shape_cast %313 : vector<16x16xf32> to vector<1x1x16x16xf32>
    tpu.vector_store %arg5[%c0_185, %c4_186, %c0_187, %c0_188], %316 {strides = array<i32>} : memref<1x8x16x16xf32, #tpu.memory_space<vmem>>, vector<1x1x16x16xf32>,
    %c20_189 = arith.constant 20 : index
    %317 = memref.load %arg3[%c20_189] : memref<32xf32, #tpu.memory_space<smem>>
    %318 = vector.broadcast %317 : f32 to vector<16x16xf32>
    %319 = arith.mulf %52, %318 : vector<16x16xf32>
    %c21_190 = arith.constant 21 : index
    %320 = memref.load %arg3[%c21_190] : memref<32xf32, #tpu.memory_space<smem>>
    %321 = vector.broadcast %320 : f32 to vector<16x16xf32>
    %322 = arith.mulf %105, %321 : vector<16x16xf32>
    %323 = arith.addf %319, %322 : vector<16x16xf32>
    %c22_191 = arith.constant 22 : index
    %324 = memref.load %arg3[%c22_191] : memref<32xf32, #tpu.memory_space<smem>>
    %325 = vector.broadcast %324 : f32 to vector<16x16xf32>
    %326 = arith.mulf %158, %325 : vector<16x16xf32>
    %327 = arith.addf %323, %326 : vector<16x16xf32>
    %c23_192 = arith.constant 23 : index
    %328 = memref.load %arg3[%c23_192] : memref<32xf32, #tpu.memory_space<smem>>
    %329 = vector.broadcast %328 : f32 to vector<16x16xf32>
    %330 = arith.mulf %211, %329 : vector<16x16xf32>
    %331 = arith.addf %327, %330 : vector<16x16xf32>
    %c5_193 = arith.constant 5 : index
    %332 = memref.load %arg4[%c5_193] : memref<8xf32, #tpu.memory_space<smem>>
    %333 = vector.broadcast %332 : f32 to vector<16x16xf32>
    %334 = arith.addf %331, %333 : vector<16x16xf32>
    %c0_194 = arith.constant 0 : index
    %c5_195 = arith.constant 5 : index
    %c0_196 = arith.constant 0 : index
    %c0_197 = arith.constant 0 : index
    %335 = vector.load %arg5[%c0_194, %c5_195, %c0_196, %c0_197] : memref<1x8x16x16xf32, #tpu.memory_space<vmem>>, vector<1x1x16x16xf32>
    %336 = vector.shape_cast %335 : vector<1x1x16x16xf32> to vector<16x16xf32>
    %337 = vector.shape_cast %334 : vector<16x16xf32> to vector<1x1x16x16xf32>
    tpu.vector_store %arg5[%c0_194, %c5_195, %c0_196, %c0_197], %337 {strides = array<i32>} : memref<1x8x16x16xf32, #tpu.memory_space<vmem>>, vector<1x1x16x16xf32>,
    %c24_198 = arith.constant 24 : index
    %338 = memref.load %arg3[%c24_198] : memref<32xf32, #tpu.memory_space<smem>>
    %339 = vector.broadcast %338 : f32 to vector<16x16xf32>
    %340 = arith.mulf %52, %339 : vector<16x16xf32>
    %c25_199 = arith.constant 25 : index
    %341 = memref.load %arg3[%c25_199] : memref<32xf32, #tpu.memory_space<smem>>
    %342 = vector.broadcast %341 : f32 to vector<16x16xf32>
    %343 = arith.mulf %105, %342 : vector<16x16xf32>
    %344 = arith.addf %340, %343 : vector<16x16xf32>
    %c26_200 = arith.constant 26 : index
    %345 = memref.load %arg3[%c26_200] : memref<32xf32, #tpu.memory_space<smem>>
    %346 = vector.broadcast %345 : f32 to vector<16x16xf32>
    %347 = arith.mulf %158, %346 : vector<16x16xf32>
    %348 = arith.addf %344, %347 : vector<16x16xf32>
    %c27_201 = arith.constant 27 : index
    %349 = memref.load %arg3[%c27_201] : memref<32xf32, #tpu.memory_space<smem>>
    %350 = vector.broadcast %349 : f32 to vector<16x16xf32>
    %351 = arith.mulf %211, %350 : vector<16x16xf32>
    %352 = arith.addf %348, %351 : vector<16x16xf32>
    %c6_202 = arith.constant 6 : index
    %353 = memref.load %arg4[%c6_202] : memref<8xf32, #tpu.memory_space<smem>>
    %354 = vector.broadcast %353 : f32 to vector<16x16xf32>
    %355 = arith.addf %352, %354 : vector<16x16xf32>
    %c0_203 = arith.constant 0 : index
    %c6_204 = arith.constant 6 : index
    %c0_205 = arith.constant 0 : index
    %c0_206 = arith.constant 0 : index
    %356 = vector.load %arg5[%c0_203, %c6_204, %c0_205, %c0_206] : memref<1x8x16x16xf32, #tpu.memory_space<vmem>>, vector<1x1x16x16xf32>
    %357 = vector.shape_cast %356 : vector<1x1x16x16xf32> to vector<16x16xf32>
    %358 = vector.shape_cast %355 : vector<16x16xf32> to vector<1x1x16x16xf32>
    tpu.vector_store %arg5[%c0_203, %c6_204, %c0_205, %c0_206], %358 {strides = array<i32>} : memref<1x8x16x16xf32, #tpu.memory_space<vmem>>, vector<1x1x16x16xf32>,
    %c28_207 = arith.constant 28 : index
    %359 = memref.load %arg3[%c28_207] : memref<32xf32, #tpu.memory_space<smem>>
    %360 = vector.broadcast %359 : f32 to vector<16x16xf32>
    %361 = arith.mulf %52, %360 : vector<16x16xf32>
    %c29_208 = arith.constant 29 : index
    %362 = memref.load %arg3[%c29_208] : memref<32xf32, #tpu.memory_space<smem>>
    %363 = vector.broadcast %362 : f32 to vector<16x16xf32>
    %364 = arith.mulf %105, %363 : vector<16x16xf32>
    %365 = arith.addf %361, %364 : vector<16x16xf32>
    %c30_209 = arith.constant 30 : index
    %366 = memref.load %arg3[%c30_209] : memref<32xf32, #tpu.memory_space<smem>>
    %367 = vector.broadcast %366 : f32 to vector<16x16xf32>
    %368 = arith.mulf %158, %367 : vector<16x16xf32>
    %369 = arith.addf %365, %368 : vector<16x16xf32>
    %c31_210 = arith.constant 31 : index
    %370 = memref.load %arg3[%c31_210] : memref<32xf32, #tpu.memory_space<smem>>
    %371 = vector.broadcast %370 : f32 to vector<16x16xf32>
    %372 = arith.mulf %211, %371 : vector<16x16xf32>
    %373 = arith.addf %369, %372 : vector<16x16xf32>
    %c7_211 = arith.constant 7 : index
    %374 = memref.load %arg4[%c7_211] : memref<8xf32, #tpu.memory_space<smem>>
    %375 = vector.broadcast %374 : f32 to vector<16x16xf32>
    %376 = arith.addf %373, %375 : vector<16x16xf32>
    %c0_212 = arith.constant 0 : index
    %c7_213 = arith.constant 7 : index
    %c0_214 = arith.constant 0 : index
    %c0_215 = arith.constant 0 : index
    %377 = vector.load %arg5[%c0_212, %c7_213, %c0_214, %c0_215] : memref<1x8x16x16xf32, #tpu.memory_space<vmem>>, vector<1x1x16x16xf32>
    %378 = vector.shape_cast %377 : vector<1x1x16x16xf32> to vector<16x16xf32>
    %379 = vector.shape_cast %376 : vector<16x16xf32> to vector<1x1x16x16xf32>
    tpu.vector_store %arg5[%c0_212, %c7_213, %c0_214, %c0_215], %379 {strides = array<i32>} : memref<1x8x16x16xf32, #tpu.memory_space<vmem>>, vector<1x1x16x16xf32>,
    return
  }
  func.func @transform_0(%arg0: i32) -> (i32, i32, i32, i32) {
    %c0_i32 = arith.constant 0 : i32
    %c0_i32_0 = arith.constant 0 : i32
    %c0_i32_1 = arith.constant 0 : i32
    %c0_i32_2 = arith.constant 0 : i32
    return %arg0, %c0_i32, %c0_i32_0, %c0_i32_1 : i32, i32, i32, i32
  }
  func.func @transform_1(%arg0: i32) -> i32 {
    %c0_i32 = arith.constant 0 : i32
    %c0_i32_0 = arith.constant 0 : i32
    return %c0_i32 : i32
  }
  func.func @transform_2(%arg0: i32) -> i32 {
    %c0_i32 = arith.constant 0 : i32
    %c0_i32_0 = arith.constant 0 : i32
    return %c0_i32 : i32
  }
  func.func @transform_3(%arg0: i32) -> i32 {
    %c0_i32 = arith.constant 0 : i32
    %c0_i32_0 = arith.constant 0 : i32
    return %c0_i32 : i32
  }
  func.func @transform_4(%arg0: i32) -> (i32, i32, i32, i32) {
    %c0_i32 = arith.constant 0 : i32
    %c0_i32_0 = arith.constant 0 : i32
    %c0_i32_1 = arith.constant 0 : i32
    %c0_i32_2 = arith.constant 0 : i32
    return %arg0, %c0_i32, %c0_i32_0, %c0_i32_1 : i32, i32, i32, i32
  }
}

</mosaic_0001>

<llo_original>
// kernel: tpu_custom_call.1
$region0: #{tpu_custom_call.1}
  #allocation0 [shape = 'u32[]', space=smem, size = 0x4, offset = 0x4, fixed_abs, tag = 'smem constant byte address 0x4 - core index']
  #allocation1 [shape = 'u32[144,128]{1,0:T(1,128)}', space=vmem, size = 0x12000, scoped, tag = 'internal scratch']
  %s0 = inlined_call_operand.vmem [shape: f32[2,4,20,20], index: 0, kind: input, shape index: {}]
  %s1 = inlined_call_operand.vmem [shape: f32[36], index: 1, kind: input, shape index: {}]
  %s2 = inlined_call_operand.vmem [shape: f32[32], index: 2, kind: input, shape index: {}]
  %s3 = inlined_call_operand.vmem [shape: f32[8], index: 3, kind: input, shape index: {}]
  %s4 = inlined_call_operand.hbm [shape: f32[2,8,16,16], index: 4, kind: output, shape index: {}]
  %s5 = sld [smem:[#allocation0]]
  $region61: #{tpu_custom_call.1} parent=0
    _
  %s7 = ssub.s32 1, %s5
  %s8 = scalar_select 0, %s7, %s5
  $region1: #{tpu_custom_call.1} parent=0
    #allocation2 [shape = 'u8[512]{0}', space=smem, size = 0x200, scoped, tag = 'input window, operand 1, single buffered']
    #allocation3 [shape = 's32[2]{0}', space=sflag, size = 0x8, scoped, tag = 'scoped memory for tpu_custom_call.1']
    #allocation4 [shape = 's32[2]{0}', space=sflag, size = 0x8, scoped, tag = 'scoped memory for tpu_custom_call.1']
    #allocation5 [shape = 'u8[512]{0}', space=smem, size = 0x200, scoped, tag = 'input window, operand 2, single buffered']
    #allocation6 [shape = 's32[1]{0}', space=sflag, size = 0x4, scoped, tag = 'scoped memory for tpu_custom_call.1']
    #allocation7 [shape = 'u8[512]{0}', space=smem, size = 0x200, scoped, tag = 'input window, operand 3, single buffered']
    #allocation8 [shape = 'u8[131072]{0}', space=vmem, size = 0x20000, scoped, tag = 'output window, operand 0']
    %9 = vsyncpa [#allocation4], 0
    %10 = vsyncpa [#allocation6], 0
    %11 = vsyncpa [#allocation3], 0
    %s12 = scalar_lea.sflag [#allocation3], 1
    %13 = vsyncpa %s12, 0
    loop: start=0, step=1, limit=4
    $region2: #{tpu_custom_call.1} parent=1 // loop_pre_header
      _
    $region3: #{tpu_custom_call.1} parent=1 // loop_header
      %s15 = sphi 0, %s19
      %p16 = scmp.ge.s32.totalorder %s15, 4
      %s25 = sphi 0, %s27
      %s28 = sphi 0, %s25
      %s29 = sphi 0, %s28
      %s45 = sphi 0, %s29
      %s49 = sphi 0, %s49
      %s51 = sphi 0, %s49
      %s52 = sphi 0, %s51
      %s66 = sphi 0, %s52
      %s70 = sphi 0, %s70
      %s72 = sphi 0, %s70
      %s73 = sphi 0, %s72
      %s87 = sphi 0, %s73
      %s91 = sphi 0, %s91
      %s93 = sphi 0, %s91
      %s94 = sphi 0, %s93
      %s108 = sphi 0, %s94
      %s114 = sphi 0, %s116
      %s117 = sphi 0, %s114
      %s118 = sphi 0, %s117
      %s134 = sphi 0, %s118
    $region4: #{tpu_custom_call.1} parent=1 // loop_header_branch
      %18 = sbr.rel (%p16) target = $region8
    $region5: #{tpu_custom_call.1} parent=1 // loop_body
      %s20 = ssub.s32 %s15, 1
      %s21 = ssub.s32 %s15, 2
      %s22 = sadd.s32 %s15, 1
      %s23 = ssub.s32 %s15, %s22
      %p24 = scmp.eq.s32.totalorder %s23, 0
      %s26 = sadd.s32 %s25, 1
      %s27 = scalar_select %p24, %s25, %s26
      %p30 = pneg %p24
      %p31 = scmp.eq.s32.totalorder %s15, 1
      %p32 = por %p30, %p31
      %p33 = scmp.ne.s32.totalorder %s25, %s28
      %p34 = scmp.eq.s32.totalorder %s15, 0
      %p35 = por %p33, %p34
      %p36 = scmp.ne.s32.totalorder %s25, %s28
      %p37 = scmp.eq.s32.totalorder %s20, 1
      %p38 = por %p36, %p37
      %p39 = scmp.ne.s32.totalorder %s28, %s29
      %p40 = scmp.eq.s32.totalorder %s20, 0
      %p41 = por %p39, %p40
      %p42 = scmp.ne.s32.totalorder %s28, %s29
      %p43 = scmp.eq.s32.totalorder %s21, 1
      %p44 = por %p42, %p43
      %p46 = scmp.ne.s32.totalorder %s29, %s45
      %p47 = scmp.eq.s32.totalorder %s21, 0
      %p48 = por %p46, %p47
      %s50 = sadd.s32 %s49, 1
      %p53 = scmp.eq.s32.totalorder %s15, 1
      %p54 = scmp.ne.s32.totalorder %s49, %s51
      %p55 = scmp.eq.s32.totalorder %s15, 0
      %p56 = por %p54, %p55
      %p57 = scmp.ne.s32.totalorder %s49, %s51
      %p58 = scmp.eq.s32.totalorder %s20, 1
      %p59 = por %p57, %p58
      %p60 = scmp.ne.s32.totalorder %s51, %s52
      %p61 = scmp.eq.s32.totalorder %s20, 0
      %p62 = por %p60, %p61
      %p63 = scmp.ne.s32.totalorder %s51, %s52
      %p64 = scmp.eq.s32.totalorder %s21, 1
      %p65 = por %p63, %p64
      %p67 = scmp.ne.s32.totalorder %s52, %s66
      %p68 = scmp.eq.s32.totalorder %s21, 0
      %p69 = por %p67, %p68
      %s71 = sadd.s32 %s70, 1
      %p74 = scmp.eq.s32.totalorder %s15, 1
      %p75 = scmp.ne.s32.totalorder %s70, %s72
      %p76 = scmp.eq.s32.totalorder %s15, 0
      %p77 = por %p75, %p76
      %p78 = scmp.ne.s32.totalorder %s70, %s72
      %p79 = scmp.eq.s32.totalorder %s20, 1
      %p80 = por %p78, %p79
      %p81 = scmp.ne.s32.totalorder %s72, %s73
      %p82 = scmp.eq.s32.totalorder %s20, 0
      %p83 = por %p81, %p82
      %p84 = scmp.ne.s32.totalorder %s72, %s73
      %p85 = scmp.eq.s32.totalorder %s21, 1
      %p86 = por %p84, %p85
      %p88 = scmp.ne.s32.totalorder %s73, %s87
      %p89 = scmp.eq.s32.totalorder %s21, 0
      %p90 = por %p88, %p89
      %s92 = sadd.s32 %s91, 1
      %p95 = scmp.eq.s32.totalorder %s15, 1
      %p96 = scmp.ne.s32.totalorder %s91, %s93
      %p97 = scmp.eq.s32.totalorder %s15, 0
      %p98 = por %p96, %p97
      %p99 = scmp.ne.s32.totalorder %s91, %s93
      %p100 = scmp.eq.s32.totalorder %s20, 1
      %p101 = por %p99, %p100
      %p102 = scmp.ne.s32.totalorder %s93, %s94
      %p103 = scmp.eq.s32.totalorder %s20, 0
      %p104 = por %p102, %p103
      %p105 = scmp.ne.s32.totalorder %s93, %s94
      %p106 = scmp.eq.s32.totalorder %s21, 1
      %p107 = por %p105, %p106
      %p109 = scmp.ne.s32.totalorder %s94, %s108
      %p110 = scmp.eq.s32.totalorder %s21, 0
      %p111 = por %p109, %p110
      %s112 = ssub.s32 %s15, %s22
      %p113 = scmp.eq.s32.totalorder %s112, 0
      %s115 = sadd.s32 %s114, 1
      %s116 = scalar_select %p113, %s114, %s115
      %p119 = pneg %p113
      %p120 = scmp.eq.s32.totalorder %s15, 1
      %p121 = por %p119, %p120
      %p122 = scmp.ne.s32.totalorder %s114, %s117
      %p123 = scmp.eq.s32.totalorder %s15, 0
      %p124 = por %p122, %p123
      %p125 = scmp.ne.s32.totalorder %s114, %s117
      %p126 = scmp.eq.s32.totalorder %s20, 1
      %p127 = por %p125, %p126
      %p128 = scmp.ne.s32.totalorder %s117, %s118
      %p129 = scmp.eq.s32.totalorder %s20, 0
      %p130 = por %p128, %p129
      %p131 = scmp.ne.s32.totalorder %s117, %s118
      %p132 = scmp.eq.s32.totalorder %s21, 1
      %p133 = por %p131, %p132
      %p135 = scmp.ne.s32.totalorder %s118, %s134
      %p136 = scmp.eq.s32.totalorder %s21, 0
      %p137 = por %p135, %p136
      %p138 = scmp.le.s32.totalorder 1, %s15
      %p139 = scmp.lt.s32.totalorder %s15, 3
      %p140 = pnand %p138, %p139
      %p141 = pneg %p140
      // Predicated region
      $region9: #{tpu_custom_call.1} parent=5 // pred_check
        _
      $region10: #{tpu_custom_call.1} parent=5 // pred_check_branch
        %143 = sbr.rel (%p140) target = $region12
      $region11: #{tpu_custom_call.1} parent=5 // pred_region
        %s144 = ssub.s32 %s15, 1
        // Predicated region
        $region13: #{tpu_custom_call.1} parent=11 // pred_check
          %p145 = pneg %p62
        $region14: #{tpu_custom_call.1} parent=11 // pred_check_branch
          %147 = sbr.rel (%p145) target = $region16
        $region15: #{tpu_custom_call.1} parent=11 // pred_region
          %s149 = ssub.s32 16, 16
          %150 = vsyncadd [#allocation4], %s149
          %s152 = sshll.u32 %s1, 4
          %s153 = int_to_ptr.vmem [resolvable:$true] %s152
          %155 = dma.vmem_to_smem %s153, 16, [#allocation2], [#allocation4]
        $region16: #{tpu_custom_call.1} parent=11 // pred_fallthru
          _
        // Predicated region
        $region17: #{tpu_custom_call.1} parent=11 // pred_check
          %p156 = pneg %p83
        $region18: #{tpu_custom_call.1} parent=11 // pred_check_branch
          %158 = sbr.rel (%p156) target = $region20
        $region19: #{tpu_custom_call.1} parent=11 // pred_region
          %s160 = ssub.s32 16, 16
          %161 = vsyncadd [#allocation6], %s160
          %s163 = sshll.u32 %s2, 4
          %s164 = int_to_ptr.vmem [resolvable:$true] %s163
          %166 = dma.vmem_to_smem %s164, 16, [#allocation5], [#allocation6]
        $region20: #{tpu_custom_call.1} parent=11 // pred_fallthru
          _
        // Predicated region
        $region21: #{tpu_custom_call.1} parent=11 // pred_check
          %p167 = pneg %p104
        $region22: #{tpu_custom_call.1} parent=11 // pred_check_branch
          %169 = sbr.rel (%p167) target = $region24
        $region23: #{tpu_custom_call.1} parent=11 // pred_region
          %s171 = ssub.s32 16, 16
          %172 = vsyncadd [#allocation6], %s171
          %s174 = sshll.u32 %s3, 4
          %s175 = int_to_ptr.vmem [resolvable:$true] %s174
          %177 = dma.vmem_to_smem %s175, 16, [#allocation7], [#allocation6]
        $region24: #{tpu_custom_call.1} parent=11 // pred_fallthru
          _
      $region12: #{tpu_custom_call.1} parent=5 // pred_fallthru
        _
      %p178 = scmp.lt.s32.totalorder %s15, 2
      // Predicated region
      $region25: #{tpu_custom_call.1} parent=5 // pred_check
        %p179 = pneg %p178
      $region26: #{tpu_custom_call.1} parent=5 // pred_check_branch
        %181 = sbr.rel (%p179) target = $region28
      $region27: #{tpu_custom_call.1} parent=5 // pred_region
        // Predicated region
        $region29: #{tpu_custom_call.1} parent=27 // pred_check
          %p182 = pneg %p35
        $region30: #{tpu_custom_call.1} parent=27 // pred_check_branch
          %184 = sbr.rel (%p182) target = $region32
        $region31: #{tpu_custom_call.1} parent=27 // pred_region
          %p185 = scmp.lt.s32.totalorder %s15, 1
          %s186 = scalar_select %p185, %s15, 1
          %s187 = smul.addr %s186, 12
          %s188 = smul.addr %s187, 8
          %s189 = scalar_lea.vmem %s0, %s188
        $region32: #{tpu_custom_call.1} parent=27 // pred_fallthru
          _
      $region28: #{tpu_custom_call.1} parent=5 // pred_fallthru
        _
      %p190 = scmp.le.s32.totalorder 1, %s15
      %p191 = scmp.lt.s32.totalorder %s15, 3
      %p192 = pnand %p190, %p191
      %p193 = pneg %p192
      // Predicated region
      $region33: #{tpu_custom_call.1} parent=5 // pred_check
        _
      $region34: #{tpu_custom_call.1} parent=5 // pred_check_branch
        %195 = sbr.rel (%p192) target = $region36
      $region35: #{tpu_custom_call.1} parent=5 // pred_region
        %s196 = ssub.s32 %s15, 1
        // Predicated region
        $region37: #{tpu_custom_call.1} parent=35 // pred_check
          %p197 = pneg %p62
        $region38: #{tpu_custom_call.1} parent=35 // pred_check_branch
          %199 = sbr.rel (%p197) target = $region40
        $region39: #{tpu_custom_call.1} parent=35 // pred_region
          %200 = dma.done [#allocation4], 16
        $region40: #{tpu_custom_call.1} parent=35 // pred_fallthru
          _
        // Predicated region
        $region41: #{tpu_custom_call.1} parent=35 // pred_check
          %p201 = pneg %p83
        $region42: #{tpu_custom_call.1} parent=35 // pred_check_branch
          %203 = sbr.rel (%p201) target = $region44
        $region43: #{tpu_custom_call.1} parent=35 // pred_region
          %204 = dma.done [#allocation6], 16
        $region44: #{tpu_custom_call.1} parent=35 // pred_fallthru
          _
        // Predicated region
        $region45: #{tpu_custom_call.1} parent=35 // pred_check
          %p205 = pneg %p104
        $region46: #{tpu_custom_call.1} parent=35 // pred_check_branch
          %207 = sbr.rel (%p205) target = $region48
        $region47: #{tpu_custom_call.1} parent=35 // pred_region
          %208 = dma.done [#allocation6], 16
        $region48: #{tpu_custom_call.1} parent=35 // pred_fallthru
          _
        %209 = sfence
        %p210 = scmp.lt.s32.totalorder %s20, 1
        %s211 = scalar_select %p210, %s20, 1
        %s212 = smul.addr %s211, 12
        %s213 = smul.addr %s212, 8
        %s214 = scalar_lea.vmem %s0, %s213
        %p215 = pneg %p41
        %p216 = pneg %p38
        %p217 = pneg %p62
        %p218 = pneg %p59
        %p219 = pneg %p83
        %p220 = pneg %p80
        %p221 = pneg %p104
        %p222 = pneg %p101
        %p223 = pneg %p130
        %p224 = pneg %p127
        %s225 = sand.u32 %s117, 1
        %s226 = scalar_lea.sflag [#allocation3], %s225
        %s227 = sand.u32 %s117, 1
        %s228 = smul.addr %s227, 128
        %s229 = scalar_lea.vmem [#allocation8], %s228
        %p230 = scmp.lt.s32.totalorder %s20, 1
        %s231 = scalar_select %p230, %s20, 1
        %s232 = smul.addr %s231, 12
        %s233 = smul.addr %s232, 8
        %s234 = scalar_lea.vmem %s0, %s233
        %v235 = vld [vmem:[%s234] sm:$0xff]
        %v236 = vld [vmem:[%s234 + $0x8] sm:$0xff]
        %s237 = sld [smem:[#allocation2]]
        %v238 = vstv %s237
        %v239 = vmul.f32 %v235, %v238
        %v240 = vmul.f32 %v236, %v238
        %s241 = sld [smem:[#allocation2 + $0x1]]
        %v242 = vstv %s241
        %v243 = vmul.f32 %v235, %v242
        %v244 = vmul.f32 %v236, %v242
        %247 = vrot.lane.b32.xlu0 %v243, 126
        %v248 = vpop.permute.xlu0 %247
        %249 = vrot.lane.b32.xlu0 %v244, 126
        %v250 = vpop.permute.xlu0 %249
        %v253 = vadd.f32 %v239, %v248
        %v254 = vadd.f32 %v240, %v250
        %s255 = sld [smem:[#allocation2 + $0x2]]
        %v256 = vstv %s255
        %v257 = vmul.f32 %v235, %v256
        %v258 = vmul.f32 %v236, %v256
        %261 = vrot.lane.b32.xlu0 %v257, 124
        %v262 = vpop.permute.xlu0 %261
        %263 = vrot.lane.b32.xlu0 %v258, 124
        %v264 = vpop.permute.xlu0 %263
        %v267 = vadd.f32 %v253, %v262
        %v268 = vadd.f32 %v254, %v264
        %v269 = vld [vmem:[%s234 + $0x2] sm:$0xff]
        %v270 = vld [vmem:[%s234 + $0xa] sm:$0xff]
        %s271 = sld [smem:[#allocation2 + $0x3]]
        %v272 = vstv %s271
        %v273 = vmul.f32 %v269, %v272
        %v274 = vmul.f32 %v270, %v272
        %v275 = vadd.f32 %v267, %v273
        %v276 = vadd.f32 %v268, %v274
        %s277 = sld [smem:[#allocation2 + $0x4]]
        %v278 = vstv %s277
        %v279 = vmul.f32 %v269, %v278
        %v280 = vmul.f32 %v270, %v278
        %283 = vrot.lane.b32.xlu0 %v279, 126
        %v284 = vpop.permute.xlu0 %283
        %285 = vrot.lane.b32.xlu0 %v280, 126
        %v286 = vpop.permute.xlu0 %285
        %v289 = vadd.f32 %v275, %v284
        %v290 = vadd.f32 %v276, %v286
        %s291 = sld [smem:[#allocation2 + $0x5]]
        %v292 = vstv %s291
        %v293 = vmul.f32 %v269, %v292
        %v294 = vmul.f32 %v270, %v292
        %297 = vrot.lane.b32.xlu0 %v293, 124
        %v298 = vpop.permute.xlu0 %297
        %299 = vrot.lane.b32.xlu0 %v294, 124
        %v300 = vpop.permute.xlu0 %299
        %v303 = vadd.f32 %v289, %v298
        %v304 = vadd.f32 %v290, %v300
        %v305 = vld [vmem:[%s234 + $0x4] sm:$0xff]
        %v306 = vld [vmem:[%s234 + $0xc] sm:$0xff]
        %s307 = sld [smem:[#allocation2 + $0x6]]
        %v308 = vstv %s307
        %v309 = vmul.f32 %v305, %v308
        %v310 = vmul.f32 %v306, %v308
        %v311 = vadd.f32 %v303, %v309
        %v312 = vadd.f32 %v304, %v310
        %s313 = sld [smem:[#allocation2 + $0x7]]
        %v314 = vstv %s313
        %v315 = vmul.f32 %v305, %v314
        %v316 = vmul.f32 %v306, %v314
        %319 = vrot.lane.b32.xlu0 %v315, 126
        %v320 = vpop.permute.xlu0 %319
        %321 = vrot.lane.b32.xlu0 %v316, 126
        %v322 = vpop.permute.xlu0 %321
        %v325 = vadd.f32 %v311, %v320
        %v326 = vadd.f32 %v312, %v322
        %s327 = sld [smem:[#allocation2 + $0x8]]
        %v328 = vstv %s327
        %v329 = vmul.f32 %v305, %v328
        %v330 = vmul.f32 %v306, %v328
        %333 = vrot.lane.b32.xlu0 %v329, 124
        %v334 = vpop.permute.xlu0 %333
        %335 = vrot.lane.b32.xlu0 %v330, 124
        %v336 = vpop.permute.xlu0 %335
        %v339 = vadd.f32 %v325, %v334
        %v340 = vadd.f32 %v326, %v336
        %s341 = scalar_lea.vmem %s234, 24
        %v342 = vld [vmem:[%s341] sm:$0xff]
        %v343 = vld [vmem:[%s341 + $0x8] sm:$0xff]
        %s344 = sld [smem:[#allocation2 + $0x9]]
        %v345 = vstv %s344
        %v346 = vmul.f32 %v342, %v345
        %v347 = vmul.f32 %v343, %v345
        %s348 = sld [smem:[#allocation2 + $0xa]]
        %v349 = vstv %s348
        %v350 = vmul.f32 %v342, %v349
        %v351 = vmul.f32 %v343, %v349
        %354 = vrot.lane.b32.xlu0 %v350, 126
        %v355 = vpop.permute.xlu0 %354
        %356 = vrot.lane.b32.xlu0 %v351, 126
        %v357 = vpop.permute.xlu0 %356
        %v360 = vadd.f32 %v346, %v355
        %v361 = vadd.f32 %v347, %v357
        %s362 = sld [smem:[#allocation2 + $0xb]]
        %v363 = vstv %s362
        %v364 = vmul.f32 %v342, %v363
        %v365 = vmul.f32 %v343, %v363
        %368 = vrot.lane.b32.xlu0 %v364, 124
        %v369 = vpop.permute.xlu0 %368
        %370 = vrot.lane.b32.xlu0 %v365, 124
        %v371 = vpop.permute.xlu0 %370
        %v374 = vadd.f32 %v360, %v369
        %v375 = vadd.f32 %v361, %v371
        %v376 = vld [vmem:[%s341 + $0x2] sm:$0xff]
        %v377 = vld [vmem:[%s341 + $0xa] sm:$0xff]
        %s378 = sld [smem:[#allocation2 + $0xc]]
        %v379 = vstv %s378
        %v380 = vmul.f32 %v376, %v379
        %v381 = vmul.f32 %v377, %v379
        %v382 = vadd.f32 %v374, %v380
        %v383 = vadd.f32 %v375, %v381
        %s384 = sld [smem:[#allocation2 + $0xd]]
        %v385 = vstv %s384
        %v386 = vmul.f32 %v376, %v385
        %v387 = vmul.f32 %v377, %v385
        %390 = vrot.lane.b32.xlu0 %v386, 126
        %v391 = vpop.permute.xlu0 %390
        %392 = vrot.lane.b32.xlu0 %v387, 126
        %v393 = vpop.permute.xlu0 %392
        %v396 = vadd.f32 %v382, %v391
        %v397 = vadd.f32 %v383, %v393
        %s398 = sld [smem:[#allocation2 + $0xe]]
        %v399 = vstv %s398
        %v400 = vmul.f32 %v376, %v399
        %v401 = vmul.f32 %v377, %v399
        %404 = vrot.lane.b32.xlu0 %v400, 124
        %v405 = vpop.permute.xlu0 %404
        %406 = vrot.lane.b32.xlu0 %v401, 124
        %v407 = vpop.permute.xlu0 %406
        %v410 = vadd.f32 %v396, %v405
        %v411 = vadd.f32 %v397, %v407
        %v412 = vld [vmem:[%s341 + $0x4] sm:$0xff]
        %v413 = vld [vmem:[%s341 + $0xc] sm:$0xff]
        %s414 = sld [smem:[#allocation2 + $0xf]]
        %v415 = vstv %s414
        %v416 = vmul.f32 %v412, %v415
        %v417 = vmul.f32 %v413, %v415
        %v418 = vadd.f32 %v410, %v416
        %v419 = vadd.f32 %v411, %v417
        %s420 = sld [smem:[#allocation2 + $0x10]]
        %v421 = vstv %s420
        %v422 = vmul.f32 %v412, %v421
        %v423 = vmul.f32 %v413, %v421
        %426 = vrot.lane.b32.xlu0 %v422, 126
        %v427 = vpop.permute.xlu0 %426
        %428 = vrot.lane.b32.xlu0 %v423, 126
        %v429 = vpop.permute.xlu0 %428
        %v432 = vadd.f32 %v418, %v427
        %v433 = vadd.f32 %v419, %v429
        %s434 = sld [smem:[#allocation2 + $0x11]]
        %v435 = vstv %s434
        %v436 = vmul.f32 %v412, %v435
        %v437 = vmul.f32 %v413, %v435
        %440 = vrot.lane.b32.xlu0 %v436, 124
        %v441 = vpop.permute.xlu0 %440
        %442 = vrot.lane.b32.xlu0 %v437, 124
        %v443 = vpop.permute.xlu0 %442
        %v446 = vadd.f32 %v432, %v441
        %v447 = vadd.f32 %v433, %v443
        %s448 = scalar_lea.vmem %s234, 48
        %v449 = vld [vmem:[%s448] sm:$0xff]
        %v450 = vld [vmem:[%s448 + $0x8] sm:$0xff]
        %s451 = sld [smem:[#allocation2 + $0x12]]
        %v452 = vstv %s451
        %v453 = vmul.f32 %v449, %v452
        %v454 = vmul.f32 %v450, %v452
        %s455 = sld [smem:[#allocation2 + $0x13]]
        %v456 = vstv %s455
        %v457 = vmul.f32 %v449, %v456
        %v458 = vmul.f32 %v450, %v456
        %461 = vrot.lane.b32.xlu0 %v457, 126
        %v462 = vpop.permute.xlu0 %461
        %463 = vrot.lane.b32.xlu0 %v458, 126
        %v464 = vpop.permute.xlu0 %463
        %v467 = vadd.f32 %v453, %v462
        %v468 = vadd.f32 %v454, %v464
        %s469 = sld [smem:[#allocation2 + $0x14]]
        %v470 = vstv %s469
        %v471 = vmul.f32 %v449, %v470
        %v472 = vmul.f32 %v450, %v470
        %475 = vrot.lane.b32.xlu0 %v471, 124
        %v476 = vpop.permute.xlu0 %475
        %477 = vrot.lane.b32.xlu0 %v472, 124
        %v478 = vpop.permute.xlu0 %477
        %v481 = vadd.f32 %v467, %v476
        %v482 = vadd.f32 %v468, %v478
        %v483 = vld [vmem:[%s448 + $0x2] sm:$0xff]
        %v484 = vld [vmem:[%s448 + $0xa] sm:$0xff]
        %s485 = sld [smem:[#allocation2 + $0x15]]
        %v486 = vstv %s485
        %v487 = vmul.f32 %v483, %v486
        %v488 = vmul.f32 %v484, %v486
        %v489 = vadd.f32 %v481, %v487
        %v490 = vadd.f32 %v482, %v488
        %s491 = sld [smem:[#allocation2 + $0x16]]
        %v492 = vstv %s491
        %v493 = vmul.f32 %v483, %v492
        %v494 = vmul.f32 %v484, %v492
        %497 = vrot.lane.b32.xlu0 %v493, 126
        %v498 = vpop.permute.xlu0 %497
        %499 = vrot.lane.b32.xlu0 %v494, 126
        %v500 = vpop.permute.xlu0 %499
        %v503 = vadd.f32 %v489, %v498
        %v504 = vadd.f32 %v490, %v500
        %s505 = sld [smem:[#allocation2 + $0x17]]
        %v506 = vstv %s505
        %v507 = vmul.f32 %v483, %v506
        %v508 = vmul.f32 %v484, %v506
        %511 = vrot.lane.b32.xlu0 %v507, 124
        %v512 = vpop.permute.xlu0 %511
        %513 = vrot.lane.b32.xlu0 %v508, 124
        %v514 = vpop.permute.xlu0 %513
        %v517 = vadd.f32 %v503, %v512
        %v518 = vadd.f32 %v504, %v514
        %v519 = vld [vmem:[%s448 + $0x4] sm:$0xff]
        %v520 = vld [vmem:[%s448 + $0xc] sm:$0xff]
        %s521 = sld [smem:[#allocation2 + $0x18]]
        %v522 = vstv %s521
        %v523 = vmul.f32 %v519, %v522
        %v524 = vmul.f32 %v520, %v522
        %v525 = vadd.f32 %v517, %v523
        %v526 = vadd.f32 %v518, %v524
        %s527 = sld [smem:[#allocation2 + $0x19]]
        %v528 = vstv %s527
        %v529 = vmul.f32 %v519, %v528
        %v530 = vmul.f32 %v520, %v528
        %533 = vrot.lane.b32.xlu0 %v529, 126
        %v534 = vpop.permute.xlu0 %533
        %535 = vrot.lane.b32.xlu0 %v530, 126
        %v536 = vpop.permute.xlu0 %535
        %v539 = vadd.f32 %v525, %v534
        %v540 = vadd.f32 %v526, %v536
        %s541 = sld [smem:[#allocation2 + $0x1a]]
        %v542 = vstv %s541
        %v543 = vmul.f32 %v519, %v542
        %v544 = vmul.f32 %v520, %v542
        %547 = vrot.lane.b32.xlu0 %v543, 124
        %v548 = vpop.permute.xlu0 %547
        %549 = vrot.lane.b32.xlu0 %v544, 124
        %v550 = vpop.permute.xlu0 %549
        %v553 = vadd.f32 %v539, %v548
        %v554 = vadd.f32 %v540, %v550
        %s555 = scalar_lea.vmem %s234, 72
        %v556 = vld [vmem:[%s555] sm:$0xff]
        %v557 = vld [vmem:[%s555 + $0x8] sm:$0xff]
        %s558 = sld [smem:[#allocation2 + $0x1b]]
        %v559 = vstv %s558
        %v560 = vmul.f32 %v556, %v559
        %v561 = vmul.f32 %v557, %v559
        %s562 = sld [smem:[#allocation2 + $0x1c]]
        %v563 = vstv %s562
        %v564 = vmul.f32 %v556, %v563
        %v565 = vmul.f32 %v557, %v563
        %568 = vrot.lane.b32.xlu0 %v564, 126
        %v569 = vpop.permute.xlu0 %568
        %570 = vrot.lane.b32.xlu0 %v565, 126
        %v571 = vpop.permute.xlu0 %570
        %v574 = vadd.f32 %v560, %v569
        %v575 = vadd.f32 %v561, %v571
        %s576 = sld [smem:[#allocation2 + $0x1d]]
        %v577 = vstv %s576
        %v578 = vmul.f32 %v556, %v577
        %v579 = vmul.f32 %v557, %v577
        %582 = vrot.lane.b32.xlu0 %v578, 124
        %v583 = vpop.permute.xlu0 %582
        %584 = vrot.lane.b32.xlu0 %v579, 124
        %v585 = vpop.permute.xlu0 %584
        %v588 = vadd.f32 %v574, %v583
        %v589 = vadd.f32 %v575, %v585
        %v590 = vld [vmem:[%s555 + $0x2] sm:$0xff]
        %v591 = vld [vmem:[%s555 + $0xa] sm:$0xff]
        %s592 = sld [smem:[#allocation2 + $0x1e]]
        %v593 = vstv %s592
        %v594 = vmul.f32 %v590, %v593
        %v595 = vmul.f32 %v591, %v593
        %v596 = vadd.f32 %v588, %v594
        %v597 = vadd.f32 %v589, %v595
        %s598 = sld [smem:[#allocation2 + $0x1f]]
        %v599 = vstv %s598
        %v600 = vmul.f32 %v590, %v599
        %v601 = vmul.f32 %v591, %v599
        %604 = vrot.lane.b32.xlu0 %v600, 126
        %v605 = vpop.permute.xlu0 %604
        %606 = vrot.lane.b32.xlu0 %v601, 126
        %v607 = vpop.permute.xlu0 %606
        %v610 = vadd.f32 %v596, %v605
        %v611 = vadd.f32 %v597, %v607
        %s612 = sld [smem:[#allocation2 + $0x20]]
        %v613 = vstv %s612
        %v614 = vmul.f32 %v590, %v613
        %v615 = vmul.f32 %v591, %v613
        %618 = vrot.lane.b32.xlu0 %v614, 124
        %v619 = vpop.permute.xlu0 %618
        %620 = vrot.lane.b32.xlu0 %v615, 124
        %v621 = vpop.permute.xlu0 %620
        %v624 = vadd.f32 %v610, %v619
        %v625 = vadd.f32 %v611, %v621
        %v626 = vld [vmem:[%s555 + $0x4] sm:$0xff]
        %v627 = vld [vmem:[%s555 + $0xc] sm:$0xff]
        %s628 = sld [smem:[#allocation2 + $0x21]]
        %v629 = vstv %s628
        %v630 = vmul.f32 %v626, %v629
        %v631 = vmul.f32 %v627, %v629
        %v632 = vadd.f32 %v624, %v630
        %v633 = vadd.f32 %v625, %v631
        %s634 = sld [smem:[#allocation2 + $0x22]]
        %v635 = vstv %s634
        %v636 = vmul.f32 %v626, %v635
        %v637 = vmul.f32 %v627, %v635
        %640 = vrot.lane.b32.xlu0 %v636, 126
        %v641 = vpop.permute.xlu0 %640
        %642 = vrot.lane.b32.xlu0 %v637, 126
        %v643 = vpop.permute.xlu0 %642
        %v646 = vadd.f32 %v632, %v641
        %v647 = vadd.f32 %v633, %v643
        %s648 = sld [smem:[#allocation2 + $0x23]]
        %v649 = vstv %s648
        %v650 = vmul.f32 %v626, %v649
        %v651 = vmul.f32 %v627, %v649
        %654 = vrot.lane.b32.xlu0 %v650, 124
        %v655 = vpop.permute.xlu0 %654
        %656 = vrot.lane.b32.xlu0 %v651, 124
        %v657 = vpop.permute.xlu0 %656
        %v660 = vadd.f32 %v646, %v655
        %v661 = vadd.f32 %v647, %v657
        %s662 = sld [smem:[#allocation5]]
        %v663 = vstv %s662
        %v664 = vmul.f32 %v339, %v663
        %v665 = vmul.f32 %v340, %v663
        %s666 = sld [smem:[#allocation5 + $0x1]]
        %v667 = vstv %s666
        %v668 = vmul.f32 %v446, %v667
        %v669 = vmul.f32 %v447, %v667
        %v670 = vadd.f32 %v664, %v668
        %v671 = vadd.f32 %v665, %v669
        %s672 = sld [smem:[#allocation5 + $0x2]]
        %v673 = vstv %s672
        %v674 = vmul.f32 %v553, %v673
        %v675 = vmul.f32 %v554, %v673
        %v676 = vadd.f32 %v670, %v674
        %v677 = vadd.f32 %v671, %v675
        %s678 = sld [smem:[#allocation5 + $0x3]]
        %v679 = vstv %s678
        %v680 = vmul.f32 %v660, %v679
        %v681 = vmul.f32 %v661, %v679
        %v682 = vadd.f32 %v676, %v680
        %v683 = vadd.f32 %v677, %v681
        %s684 = sld [smem:[#allocation7]]
        %v685 = vstv %s684
        %v686 = vadd.f32 %v682, %v685
        %v687 = vadd.f32 %v683, %v685
        %vm688 = vcmask 130048
        %689 = vst.msk [vmem:[%s229] sm:$0xff] %vm688, %v686
        %690 = vst.msk [vmem:[%s229 + $0x8] sm:$0xff] %vm688, %v687
        %s691 = sld [smem:[#allocation5 + $0x4]]
        %v692 = vstv %s691
        %v693 = vmul.f32 %v339, %v692
        %v694 = vmul.f32 %v340, %v692
        %s695 = sld [smem:[#allocation5 + $0x5]]
        %v696 = vstv %s695
        %v697 = vmul.f32 %v446, %v696
        %v698 = vmul.f32 %v447, %v696
        %v699 = vadd.f32 %v693, %v697
        %v700 = vadd.f32 %v694, %v698
        %s701 = sld [smem:[#allocation5 + $0x6]]
        %v702 = vstv %s701
        %v703 = vmul.f32 %v553, %v702
        %v704 = vmul.f32 %v554, %v702
        %v705 = vadd.f32 %v699, %v703
        %v706 = vadd.f32 %v700, %v704
        %s707 = sld [smem:[#allocation5 + $0x7]]
        %v708 = vstv %s707
        %v709 = vmul.f32 %v660, %v708
        %v710 = vmul.f32 %v661, %v708
        %v711 = vadd.f32 %v705, %v709
        %v712 = vadd.f32 %v706, %v710
        %s713 = sld [smem:[#allocation7 + $0x1]]
        %v714 = vstv %s713
        %v715 = vadd.f32 %v711, %v714
        %v716 = vadd.f32 %v712, %v714
        %s717 = scalar_lea.vmem %s229, 16 [#allocation8]
        %718 = vst.msk [vmem:[%s717] sm:$0xff] %vm688, %v715
        %719 = vst.msk [vmem:[%s717 + $0x8] sm:$0xff] %vm688, %v716
        %s720 = sld [smem:[#allocation5 + $0x8]]
        %v721 = vstv %s720
        %v722 = vmul.f32 %v339, %v721
        %v723 = vmul.f32 %v340, %v721
        %s724 = sld [smem:[#allocation5 + $0x9]]
        %v725 = vstv %s724
        %v726 = vmul.f32 %v446, %v725
        %v727 = vmul.f32 %v447, %v725
        %v728 = vadd.f32 %v722, %v726
        %v729 = vadd.f32 %v723, %v727
        %s730 = sld [smem:[#allocation5 + $0xa]]
        %v731 = vstv %s730
        %v732 = vmul.f32 %v553, %v731
        %v733 = vmul.f32 %v554, %v731
        %v734 = vadd.f32 %v728, %v732
        %v735 = vadd.f32 %v729, %v733
        %s736 = sld [smem:[#allocation5 + $0xb]]
        %v737 = vstv %s736
        %v738 = vmul.f32 %v660, %v737
        %v739 = vmul.f32 %v661, %v737
        %v740 = vadd.f32 %v734, %v738
        %v741 = vadd.f32 %v735, %v739
        %s742 = sld [smem:[#allocation7 + $0x2]]
        %v743 = vstv %s742
        %v744 = vadd.f32 %v740, %v743
        %v745 = vadd.f32 %v741, %v743
        %s746 = scalar_lea.vmem %s229, 32 [#allocation8]
        %747 = vst.msk [vmem:[%s746] sm:$0xff] %vm688, %v744
        %748 = vst.msk [vmem:[%s746 + $0x8] sm:$0xff] %vm688, %v745
        %s749 = sld [smem:[#allocation5 + $0xc]]
        %v750 = vstv %s749
        %v751 = vmul.f32 %v339, %v750
        %v752 = vmul.f32 %v340, %v750
        %s753 = sld [smem:[#allocation5 + $0xd]]
        %v754 = vstv %s753
        %v755 = vmul.f32 %v446, %v754
        %v756 = vmul.f32 %v447, %v754
        %v757 = vadd.f32 %v751, %v755
        %v758 = vadd.f32 %v752, %v756
        %s759 = sld [smem:[#allocation5 + $0xe]]
        %v760 = vstv %s759
        %v761 = vmul.f32 %v553, %v760
        %v762 = vmul.f32 %v554, %v760
        %v763 = vadd.f32 %v757, %v761
        %v764 = vadd.f32 %v758, %v762
        %s765 = sld [smem:[#allocation5 + $0xf]]
        %v766 = vstv %s765
        %v767 = vmul.f32 %v660, %v766
        %v768 = vmul.f32 %v661, %v766
        %v769 = vadd.f32 %v763, %v767
        %v770 = vadd.f32 %v764, %v768
        %s771 = sld [smem:[#allocation7 + $0x3]]
        %v772 = vstv %s771
        %v773 = vadd.f32 %v769, %v772
        %v774 = vadd.f32 %v770, %v772
        %s775 = scalar_lea.vmem %s229, 48 [#allocation8]
        %776 = vst.msk [vmem:[%s775] sm:$0xff] %vm688, %v773
        %777 = vst.msk [vmem:[%s775 + $0x8] sm:$0xff] %vm688, %v774
        %s778 = sld [smem:[#allocation5 + $0x10]]
        %v779 = vstv %s778
        %v780 = vmul.f32 %v339, %v779
        %v781 = vmul.f32 %v340, %v779
        %s782 = sld [smem:[#allocation5 + $0x11]]
        %v783 = vstv %s782
        %v784 = vmul.f32 %v446, %v783
        %v785 = vmul.f32 %v447, %v783
        %v786 = vadd.f32 %v780, %v784
        %v787 = vadd.f32 %v781, %v785
        %s788 = sld [smem:[#allocation5 + $0x12]]
        %v789 = vstv %s788
        %v790 = vmul.f32 %v553, %v789
        %v791 = vmul.f32 %v554, %v789
        %v792 = vadd.f32 %v786, %v790
        %v793 = vadd.f32 %v787, %v791
        %s794 = sld [smem:[#allocation5 + $0x13]]
        %v795 = vstv %s794
        %v796 = vmul.f32 %v660, %v795
        %v797 = vmul.f32 %v661, %v795
        %v798 = vadd.f32 %v792, %v796
        %v799 = vadd.f32 %v793, %v797
        %s800 = sld [smem:[#allocation7 + $0x4]]
        %v801 = vstv %s800
        %v802 = vadd.f32 %v798, %v801
        %v803 = vadd.f32 %v799, %v801
        %s804 = scalar_lea.vmem %s229, 64 [#allocation8]
        %805 = vst.msk [vmem:[%s804] sm:$0xff] %vm688, %v802
        %806 = vst.msk [vmem:[%s804 + $0x8] sm:$0xff] %vm688, %v803
        %s807 = sld [smem:[#allocation5 + $0x14]]
        %v808 = vstv %s807
        %v809 = vmul.f32 %v339, %v808
        %v810 = vmul.f32 %v340, %v808
        %s811 = sld [smem:[#allocation5 + $0x15]]
        %v812 = vstv %s811
        %v813 = vmul.f32 %v446, %v812
        %v814 = vmul.f32 %v447, %v812
        %v815 = vadd.f32 %v809, %v813
        %v816 = vadd.f32 %v810, %v814
        %s817 = sld [smem:[#allocation5 + $0x16]]
        %v818 = vstv %s817
        %v819 = vmul.f32 %v553, %v818
        %v820 = vmul.f32 %v554, %v818
        %v821 = vadd.f32 %v815, %v819
        %v822 = vadd.f32 %v816, %v820
        %s823 = sld [smem:[#allocation5 + $0x17]]
        %v824 = vstv %s823
        %v825 = vmul.f32 %v660, %v824
        %v826 = vmul.f32 %v661, %v824
        %v827 = vadd.f32 %v821, %v825
        %v828 = vadd.f32 %v822, %v826
        %s829 = sld [smem:[#allocation7 + $0x5]]
        %v830 = vstv %s829
        %v831 = vadd.f32 %v827, %v830
        %v832 = vadd.f32 %v828, %v830
        %s833 = scalar_lea.vmem %s229, 80 [#allocation8]
        %834 = vst.msk [vmem:[%s833] sm:$0xff] %vm688, %v831
        %835 = vst.msk [vmem:[%s833 + $0x8] sm:$0xff] %vm688, %v832
        %s836 = sld [smem:[#allocation5 + $0x18]]
        %v837 = vstv %s836
        %v838 = vmul.f32 %v339, %v837
        %v839 = vmul.f32 %v340, %v837
        %s840 = sld [smem:[#allocation5 + $0x19]]
        %v841 = vstv %s840
        %v842 = vmul.f32 %v446, %v841
        %v843 = vmul.f32 %v447, %v841
        %v844 = vadd.f32 %v838, %v842
        %v845 = vadd.f32 %v839, %v843
        %s846 = sld [smem:[#allocation5 + $0x1a]]
        %v847 = vstv %s846
        %v848 = vmul.f32 %v553, %v847
        %v849 = vmul.f32 %v554, %v847
        %v850 = vadd.f32 %v844, %v848
        %v851 = vadd.f32 %v845, %v849
        %s852 = sld [smem:[#allocation5 + $0x1b]]
        %v853 = vstv %s852
        %v854 = vmul.f32 %v660, %v853
        %v855 = vmul.f32 %v661, %v853
        %v856 = vadd.f32 %v850, %v854
        %v857 = vadd.f32 %v851, %v855
        %s858 = sld [smem:[#allocation7 + $0x6]]
        %v859 = vstv %s858
        %v860 = vadd.f32 %v856, %v859
        %v861 = vadd.f32 %v857, %v859
        %s862 = scalar_lea.vmem %s229, 96 [#allocation8]
        %863 = vst.msk [vmem:[%s862] sm:$0xff] %vm688, %v860
        %864 = vst.msk [vmem:[%s862 + $0x8] sm:$0xff] %vm688, %v861
        %s865 = sld [smem:[#allocation5 + $0x1c]]
        %v866 = vstv %s865
        %v867 = vmul.f32 %v339, %v866
        %v868 = vmul.f32 %v340, %v866
        %s869 = sld [smem:[#allocation5 + $0x1d]]
        %v870 = vstv %s869
        %v871 = vmul.f32 %v446, %v870
        %v872 = vmul.f32 %v447, %v870
        %v873 = vadd.f32 %v867, %v871
        %v874 = vadd.f32 %v868, %v872
        %s875 = sld [smem:[#allocation5 + $0x1e]]
        %v876 = vstv %s875
        %v877 = vmul.f32 %v553, %v876
        %v878 = vmul.f32 %v554, %v876
        %v879 = vadd.f32 %v873, %v877
        %v880 = vadd.f32 %v874, %v878
        %s881 = sld [smem:[#allocation5 + $0x1f]]
        %v882 = vstv %s881
        %v883 = vmul.f32 %v660, %v882
        %v884 = vmul.f32 %v661, %v882
        %v885 = vadd.f32 %v879, %v883
        %v886 = vadd.f32 %v880, %v884
        %s887 = sld [smem:[#allocation7 + $0x7]]
        %v888 = vstv %s887
        %v889 = vadd.f32 %v885, %v888
        %v890 = vadd.f32 %v886, %v888
        %s891 = scalar_lea.vmem %s229, 112 [#allocation8]
        %892 = vst.msk [vmem:[%s891] sm:$0xff] %vm688, %v889
        %893 = vst.msk [vmem:[%s891 + $0x8] sm:$0xff] %vm688, %v890
        %s894 = sand.u32 %s117, 1
        %s895 = scalar_lea.sflag [#allocation3], %s894
        %s896 = sand.u32 %s117, 1
        %s897 = smul.addr %s896, 128
        %s898 = scalar_lea.vmem [#allocation8], %s897
        // Predicated region
        $region49: #{tpu_custom_call.1} parent=35 // pred_check
          %p899 = pneg %p127
        $region50: #{tpu_custom_call.1} parent=35 // pred_check_branch
          %901 = sbr.rel (%p899) target = $region52
        $region51: #{tpu_custom_call.1} parent=35 // pred_region
          %s903 = ssub.s32 2048, 2048
          %904 = vsyncadd %s895, %s903
          %s905 = smul.addr %s20, 16
          %s906 = smul.addr %s905, 128
          %s907 = scalar_lea.hbm %s4, %s906
          %s908 = sshll.u32 %s898, 4
          %s909 = int_to_ptr.vmem [resolvable:$true] %s908
          %914 = dma.vmem_to_hbm [thread:$0]  %s909, 2048, %s907, %s895, 128, 128, 8
        $region52: #{tpu_custom_call.1} parent=35 // pred_fallthru
          _
      $region36: #{tpu_custom_call.1} parent=5 // pred_fallthru
        _
      %p915 = scmp.le.s32.totalorder 2, %s15
      // Predicated region
      $region53: #{tpu_custom_call.1} parent=5 // pred_check
        %p916 = pneg %p915
      $region54: #{tpu_custom_call.1} parent=5 // pred_check_branch
        %918 = sbr.rel (%p916) target = $region56
      $region55: #{tpu_custom_call.1} parent=5 // pred_region
        %s919 = ssub.s32 %s15, 2
        // Predicated region
        $region57: #{tpu_custom_call.1} parent=55 // pred_check
          %p920 = pneg %p133
        $region58: #{tpu_custom_call.1} parent=55 // pred_check_branch
          %922 = sbr.rel (%p920) target = $region60
        $region59: #{tpu_custom_call.1} parent=55 // pred_region
          %s923 = sand.u32 %s118, 1
          %s924 = scalar_lea.sflag [#allocation3], %s923
          %s925 = sand.u32 %s118, 1
          %s926 = smul.addr %s925, 128
          %s927 = scalar_lea.vmem [#allocation8], %s926
          %928 = dma.done %s924, 2048
        $region60: #{tpu_custom_call.1} parent=55 // pred_fallthru
          _
      $region56: #{tpu_custom_call.1} parent=5 // pred_fallthru
        _
    $region6: #{tpu_custom_call.1} parent=1 // loop_footer
      %s19 = sadd.s32 1, %s15
    $region7: #{tpu_custom_call.1} parent=1 // loop_footer_branch
      %14 = sbr.rel target = $region3
    $region8: #{tpu_custom_call.1} parent=1 // loop_exit
      _
    %929 = vsyncpa [#allocation3], 1
    %s930 = scalar_lea.sflag [#allocation3], 1
    %931 = vsyncpa %s930, 1
    %932 = vsyncpa [#allocation4], 1
    %s933 = scalar_lea.sflag [#allocation4], 1
    %934 = vsyncpa %s933, 1
    %935 = vsyncpa [#allocation6], 1

</llo_original>
